<compile_context>
chip_gen: v7x
topology: tpu7x:2x2x1
jax: 0.10.0
libtpu: 0.0.40
codegen_flags: <defaults>
</compile_context>

<pallas_src>
import jax
import jax.numpy as jnp
from jax.experimental import pallas as pl
from jax.experimental.pallas import tpu as pltpu

W0 = 2.0  # Swish w0 parameter (deterministic init value from the module)


def _round_up(v, m):
    return ((v + m - 1) // m) * m


def _pad_channels(c):
    # lane-dense padding only when the relative overhead is small (<= 25%);
    # padding tiny channel counts to 128 would inflate HBM traffic 10-30x.
    r = _round_up(c, 128)
    return r if r <= c + c // 4 else c


def _vmem_capacity_bytes():
    try:
        return int(pltpu.get_tpu_info().vmem_capacity_bytes)
    except Exception:
        return 64 << 20          # conservative fallback (v7x per-core VMEM)


def _plan_tiles(N, H, Wk, Cp, Cop, in_bytes=4, out_bytes=4):
    """Pick the output row-tile TH (divides H) and the scoped-VMEM limit.

    Generation-aware: budget = fraction of the chip's physical VMEM minus the
    (double-buffered) resident weights / halo rows, divided by the per-row
    footprint (double-buffered main/out blocks + in-kernel live f32 values).
    H is only split when the batch axis alone does not give >= 2 grid steps."""
    cap = _vmem_capacity_bytes()
    vmem_limit = min(int(cap * 0.75), 100 << 20)
    Whw = Wk + 2
    fixed = 2 * 2 * Cp * Cop * 2                 # pw_w + sc_w (bf16), x2 buffers
    fixed += 2 * (9 * Cp + Cp + 2 * Cop) * 4     # small per-channel params, x2 buffers
    fixed += 2 * 2 * Whw * Cp * in_bytes         # two 1-row halo blocks, x2 buffers
    per_row = 2 * Whw * Cp * in_bytes            # main input block, x2 buffers
    per_row += 2 * Wk * Cop * out_bytes          # output block, x2 buffers
    per_row += Wk * (4 * Cp + 2 * Cop) * 4       # live f32 values (col views, acc, z, idn)
    budget = vmem_limit - fixed - (2 << 20)
    max_rows = max(1, budget // per_row)
    divisors = [d for d in range(H, 0, -1) if H % d == 0]
    fitting = [d for d in divisors if d <= max_rows] or [1]
    TH = fitting[0]                              # largest row tile that fits VMEM
    if N * (H // TH) < 2:                        # need >=2 steps for pipeline/megacore
        for d in fitting:
            if N * (H // d) >= 2:
                TH = d
                break
    return TH, vmem_limit


# ---------------------------------------------------------------------------
# Fused kernel: depthwise 3x3 + inner residual + 1x1 conv (BN folded) + Swish
#               + 1x1 shortcut + outer residual         (channels-last)
# ---------------------------------------------------------------------------
def conv_block_kernel(xm_ref, h0_ref, h1_ref, dww_ref, dwb_ref,
                      pww_ref, scw_ref, shift_ref, scb_ref, out_ref):
    # xm_ref : (1, TH, Wk+2, Cp)   rows 0..TH-1 of the haloed window
    # h0_ref : (1, 1,  Wk+2, Cp)   window row TH   (bottom halo)
    # h1_ref : (1, 1,  Wk+2, Cp)   window row TH+1 (bottom halo)
    # dww_ref: (9, Cp)  f32        depthwise taps, row k = tap (k//3, k%3)
    # dwb_ref: (1, Cp)  f32        depthwise bias
    # pww_ref: (Cp, Cop) bf16      pointwise 1x1 weights (BN scale folded in)
    # scw_ref: (Cp, Cop) bf16      shortcut 1x1 weights
    # shift_ref, scb_ref: (1, Cop) f32   folded BN(+pw_bias) shift, shortcut bias
    # out_ref: (1, TH, Wk, Cop)
    TH, Wk, Cop = out_ref.shape[1], out_ref.shape[2], out_ref.shape[3]
    Cp = xm_ref.shape[3]

    # Stitch the (TH+2)-row haloed window; concat is along the leading
    # (non-tiled) axis so no sublane/lane relayout is involved.
    xp = jnp.concatenate([xm_ref[0], h0_ref[0], h1_ref[0]],
                         axis=0).astype(jnp.float32)          # (TH+2, Wk+2, Cp)

    # Three column-shifted views, computed ONCE; all per-tap row selections
    # below are free leading-axis slices.
    cols = tuple(xp[:, j:j + Wk, :] for j in range(3))
    x_in = cols[1][1:1 + TH]                                  # original x tile

    # Depthwise 3x3 "same": depthwise bias + inner residual folded into init.
    dww = dww_ref[...].astype(jnp.float32)
    acc = x_in + dwb_ref[0].astype(jnp.float32)
    for i in range(3):
        for j in range(3):
            acc = acc + cols[j][i:i + TH] * dww[i * 3 + j]

    # Pointwise 1x1 conv (BN scale pre-folded into the columns): bf16 MXU
    # operands, fp32 accumulation.
    y2 = acc.reshape(TH * Wk, Cp).astype(jnp.bfloat16)
    x2 = x_in.reshape(TH * Wk, Cp).astype(jnp.bfloat16)
    z = jnp.dot(y2, pww_ref[...], preferred_element_type=jnp.float32)
    z = z + shift_ref[...]                    # folded (pw_bias, BN) shift
    z = z * jax.nn.sigmoid(W0 * z)            # Swish (exp on EUP)

    # 1x1 shortcut conv on the original input + outer residual.
    idn = jnp.dot(x2, scw_ref[...], preferred_element_type=jnp.float32) + scb_ref[...]

    out_ref[0] = (z + idn).reshape(TH, Wk, Cop).astype(out_ref.dtype)


# ---------------------------------------------------------------------------
# Wrapper (NCHW in / NCHW out, matching the PyTorch module interface)
# ---------------------------------------------------------------------------
def conv_block_forward(x, p):
    N, Cin, H, W = x.shape
    Cout = p['pw_w'].shape[1]
    Cp, Cop = _pad_channels(Cin), _pad_channels(Cout)
    Wk = _round_up(W, 8)          # interior width: (8,.)-aligned slices / reshapes
    Whw = Wk + 2                  # haloed width (full-dim block => no 8-constraint)

    TH, vmem_limit = _plan_tiles(N, H, Wk, Cp, Cop,
                                 in_bytes=x.dtype.itemsize,
                                 out_bytes=x.dtype.itemsize)
    HT = H // TH

    # glue: NCHW -> NHWC + zero pad (1-row/col halo, W->Wk, channel lanes);
    # XLA fuses transpose+pad into one pass.
    # TODO(synk): keep the surrounding model NHWC to drop this and the final transpose.
    x_nhwc = jnp.transpose(x, (0, 2, 3, 1))
    xpad = jnp.pad(x_nhwc, ((0, 0), (1, 1), (1, 1 + Wk - W), (0, Cp - Cin)))

    f32, bf16 = jnp.float32, jnp.bfloat16
    dw_w = jnp.zeros((9, Cp), f32).at[:, :Cin].set(p['dw_w'].reshape(Cin, 9).T)
    dw_b = jnp.zeros((1, Cp), f32).at[0, :Cin].set(p['dw_b'])
    # fold BN scale into the pointwise columns; pw bias into the BN shift
    pw_w = jnp.zeros((Cp, Cop), bf16).at[:Cin, :Cout].set(
        (p['pw_w'] * p['bn_scale'][None, :]).astype(bf16))
    sc_w = jnp.zeros((Cp, Cop), bf16).at[:Cin, :Cout].set(p['sc_w'].astype(bf16))
    shift = jnp.zeros((1, Cop), f32).at[0, :Cout].set(
        p['pw_b'] * p['bn_scale'] + p['bn_shift'])
    sc_b = jnp.zeros((1, Cop), f32).at[0, :Cout].set(p['sc_b'])

    out_nhwc = pl.pallas_call(
        conv_block_kernel,
        out_shape=jax.ShapeDtypeStruct((N, H, Wk, Cop), x.dtype),
        grid=(N, HT),
        in_specs=[
            # main TH-row window (padded rows t*TH .. t*TH+TH-1)
            pl.BlockSpec((1, TH, Whw, Cp), lambda n, t: (n, t, 0, 0)),
            # two 1-row bottom-halo windows (padded rows (t+1)*TH and (t+1)*TH+1)
            pl.BlockSpec((1, 1, Whw, Cp), lambda n, t: (n, (t + 1) * TH, 0, 0)),
            pl.BlockSpec((1, 1, Whw, Cp), lambda n, t: (n, (t + 1) * TH + 1, 0, 0)),
            # resident parameters (constant index -> stay in VMEM across the grid)
            pl.BlockSpec((9, Cp), lambda n, t: (0, 0)),
            pl.BlockSpec((1, Cp), lambda n, t: (0, 0)),
            pl.BlockSpec((Cp, Cop), lambda n, t: (0, 0)),
            pl.BlockSpec((Cp, Cop), lambda n, t: (0, 0)),
            pl.BlockSpec((1, Cop), lambda n, t: (0, 0)),
            pl.BlockSpec((1, Cop), lambda n, t: (0, 0)),
        ],
        out_specs=pl.BlockSpec((1, TH, Wk, Cop), lambda n, t: (n, t, 0, 0)),
        compiler_params=pltpu.CompilerParams(
            dimension_semantics=("parallel", "parallel"),
            vmem_limit_bytes=vmem_limit),
    )(xpad, xpad, xpad, dw_w, dw_b, pw_w, sc_w, shift, sc_b)

    # glue: drop W / channel padding, back to NCHW
    return jnp.transpose(out_nhwc[:, :, :W, :Cout], (0, 3, 1, 2))


# ---------------------------------------------------------------------------
# Deterministic parameter init (shapes dictated by the module __init__)
# ---------------------------------------------------------------------------
def init_params(key, Cin, Cout):
    k = jax.random.split(key, 6)
    dw_w = jax.random.normal(k[0], (Cin, 3, 3), jnp.float32) * 0.1   # depthwise (C,1,3,3) squeezed
    dw_b = jax.random.normal(k[1], (Cin,), jnp.float32) * 0.1
    pw_w = jax.random.normal(k[2], (Cin, Cout), jnp.float32) * 0.1   # pointwise 1x1, stored (in,out)
    pw_b = jax.random.normal(k[3], (Cout,), jnp.float32) * 0.1
    sc_w = jax.random.normal(k[4], (Cin, Cout), jnp.float32) * 0.1   # shortcut 1x1 (Cin != Cout)
    sc_b = jax.random.normal(k[5], (Cout,), jnp.float32) * 0.1

    # BatchNorm2d default state, eval mode: gamma=1, beta=0, mean=0, var=1
    eps = 1e-5
    gamma = jnp.ones((Cout,), jnp.float32)
    beta = jnp.zeros((Cout,), jnp.float32)
    rmean = jnp.zeros((Cout,), jnp.float32)
    rvar = jnp.ones((Cout,), jnp.float32)
    inv = gamma / jnp.sqrt(rvar + eps)
    return dict(dw_w=dw_w, dw_b=dw_b, pw_w=pw_w, pw_b=pw_b,
                sc_w=sc_w, sc_b=sc_b, bn_scale=inv, bn_shift=beta - rmean * inv)


# ---------------------------------------------------------------------------
# Pure-JAX reference (same math, fp32, no Pallas) for a correctness check
# ---------------------------------------------------------------------------
def reference_forward(x, p):
    N, Cin, H, W = x.shape
    xpad = jnp.pad(x, ((0, 0), (0, 0), (1, 1), (1, 1)))
    dw = jnp.zeros_like(x)
    for i in range(3):
        for j in range(3):
            dw = dw + xpad[:, :, i:i + H, j:j + W] * p['dw_w'][None, :, i, j, None, None]
    y1 = dw + p['dw_b'].reshape(1, -1, 1, 1) + x
    z = jnp.einsum('nchw,co->nohw', y1, p['pw_w']) + p['pw_b'].reshape(1, -1, 1, 1)
    z = z * p['bn_scale'].reshape(1, -1, 1, 1) + p['bn_shift'].reshape(1, -1, 1, 1)
    z = z * jax.nn.sigmoid(W0 * z)
    idn = jnp.einsum('nchw,co->nohw', x, p['sc_w']) + p['sc_b'].reshape(1, -1, 1, 1)
    return z + idn


if __name__ == "__main__":
    N, Cin, Cout, H, W = 2, 4, 8, 16, 16
    key = jax.random.PRNGKey(0)
    kx, kp = jax.random.split(key)
    x = jax.random.normal(kx, (N, Cin, H, W), jnp.float32)
    params = init_params(kp, Cin, Cout)

    fwd = jax.jit(conv_block_forward)
    out = jax.block_until_ready(fwd(x, params))

    ref = reference_forward(x, params)
    assert out.shape == (N, Cout, H, W)
    # tolerance loosened vs the fp32 reference because the two 1x1 convs use
    # bf16 MXU operands (fp32 accumulation bounds the error)
    assert jnp.allclose(out, ref, atol=2e-2, rtol=2e-2), "mismatch vs pure-JAX reference"

    print("KERNEL_OK")
</pallas_src>

<mosaic_0001>
module attributes {stable_mosaic.version = 11 : i64} {
  func.func @conv_block_kernel(%arg0: i32, %arg1: i32, %arg2: memref<1x16x18x4xf32, #tpu.memory_space<vmem>>, %arg3: memref<1x1x18x4xf32, #tpu.memory_space<vmem>>, %arg4: memref<1x1x18x4xf32, #tpu.memory_space<vmem>>, %arg5: memref<9x4xf32, #tpu.memory_space<vmem>>, %arg6: memref<1x4xf32, #tpu.memory_space<vmem>>, %arg7: memref<4x8xbf16, #tpu.memory_space<vmem>>, %arg8: memref<4x8xbf16, #tpu.memory_space<vmem>>, %arg9: memref<1x8xf32, #tpu.memory_space<vmem>>, %arg10: memref<1x8xf32, #tpu.memory_space<vmem>>, %arg11: memref<1x16x16x8xf32, #tpu.memory_space<vmem>>) attributes {dimension_semantics = [#tpu.dimension_semantics<parallel>, #tpu.dimension_semantics<parallel>], iteration_bounds = array<i64: 2, 1>, scalar_prefetch = 0 : i64, scratch_operands = 0 : i64, tpu.core_type = #tpu.core_type<tc>, window_params = [{transform_indices = @transform_0, window_bounds = array<i64: 1, 16, 18, 4>}, {transform_indices = @transform_1, window_bounds = array<i64: 1, 1, 18, 4>}, {transform_indices = @transform_2, window_bounds = array<i64: 1, 1, 18, 4>}, {pipeline_mode = #tpu.pipeline_mode<synchronous>, transform_indices = @transform_3, window_bounds = array<i64: 9, 4>}, {pipeline_mode = #tpu.pipeline_mode<synchronous>, transform_indices = @transform_4, window_bounds = array<i64: 1, 4>}, {pipeline_mode = #tpu.pipeline_mode<synchronous>, transform_indices = @transform_5, window_bounds = array<i64: 4, 8>}, {pipeline_mode = #tpu.pipeline_mode<synchronous>, transform_indices = @transform_6, window_bounds = array<i64: 4, 8>}, {pipeline_mode = #tpu.pipeline_mode<synchronous>, transform_indices = @transform_7, window_bounds = array<i64: 1, 8>}, {pipeline_mode = #tpu.pipeline_mode<synchronous>, transform_indices = @transform_8, window_bounds = array<i64: 1, 8>}, {transform_indices = @transform_9, window_bounds = array<i64: 1, 16, 16, 8>}]} {
    %c0 = arith.constant 0 : index
    %c0_0 = arith.constant 0 : index
    %c0_1 = arith.constant 0 : index
    %c0_2 = arith.constant 0 : index
    %0 = vector.load %arg2[%c0, %c0_0, %c0_1, %c0_2] : memref<1x16x18x4xf32, #tpu.memory_space<vmem>>, vector<1x16x18x4xf32>
    %1 = vector.shape_cast %0 : vector<1x16x18x4xf32> to vector<16x18x4xf32>
    %c0_3 = arith.constant 0 : index
    %c0_4 = arith.constant 0 : index
    %c0_5 = arith.constant 0 : index
    %c0_6 = arith.constant 0 : index
    %2 = vector.load %arg3[%c0_3, %c0_4, %c0_5, %c0_6] : memref<1x1x18x4xf32, #tpu.memory_space<vmem>>, vector<1x1x18x4xf32>
    %3 = vector.shape_cast %2 : vector<1x1x18x4xf32> to vector<1x18x4xf32>
    %c0_7 = arith.constant 0 : index
    %c0_8 = arith.constant 0 : index
    %c0_9 = arith.constant 0 : index
    %c0_10 = arith.constant 0 : index
    %4 = vector.load %arg4[%c0_7, %c0_8, %c0_9, %c0_10] : memref<1x1x18x4xf32, #tpu.memory_space<vmem>>, vector<1x1x18x4xf32>
    %5 = vector.shape_cast %4 : vector<1x1x18x4xf32> to vector<1x18x4xf32>
    %6 = tpu.concatenate %1, %3, %5 in 0 : vector<16x18x4xf32>, vector<1x18x4xf32>, vector<1x18x4xf32> -> vector<18x18x4xf32>
    %7 = vector.extract_strided_slice %6 {offsets = [0, 0, 0], sizes = [18, 16, 4], strides = [1, 1, 1]} : vector<18x18x4xf32> to vector<18x16x4xf32>
    %8 = vector.extract_strided_slice %6 {offsets = [0, 1, 0], sizes = [18, 16, 4], strides = [1, 1, 1]} : vector<18x18x4xf32> to vector<18x16x4xf32>
    %9 = vector.extract_strided_slice %6 {offsets = [0, 2, 0], sizes = [18, 16, 4], strides = [1, 1, 1]} : vector<18x18x4xf32> to vector<18x16x4xf32>
    %10 = vector.extract_strided_slice %8 {offsets = [1, 0, 0], sizes = [16, 16, 4], strides = [1, 1, 1]} : vector<18x16x4xf32> to vector<16x16x4xf32>
    %c0_11 = arith.constant 0 : index
    %c0_12 = arith.constant 0 : index
    %11 = vector.load %arg5[%c0_11, %c0_12] : memref<9x4xf32, #tpu.memory_space<vmem>>, vector<9x4xf32>
    %c0_13 = arith.constant 0 : index
    %c0_14 = arith.constant 0 : index
    %12 = vector.load %arg6[%c0_13, %c0_14] : memref<1x4xf32, #tpu.memory_space<vmem>>, vector<1x4xf32>
    %13 = vector.shape_cast %12 : vector<1x4xf32> to vector<4xf32>
    %14 = vector.shape_cast %13 : vector<4xf32> to vector<1x1x4xf32>
    %15 = vector.broadcast %14 : vector<1x1x4xf32> to vector<16x16x4xf32>
    %16 = arith.addf %10, %15 : vector<16x16x4xf32>
    %17 = vector.extract_strided_slice %7 {offsets = [0, 0, 0], sizes = [16, 16, 4], strides = [1, 1, 1]} : vector<18x16x4xf32> to vector<16x16x4xf32>
    %18 = vector.extract_strided_slice %11 {offsets = [0, 0], sizes = [1, 4], strides = [1, 1]} : vector<9x4xf32> to vector<1x4xf32>
    %19 = vector.shape_cast %18 : vector<1x4xf32> to vector<4xf32>
    %20 = vector.shape_cast %19 : vector<4xf32> to vector<1x1x4xf32>
    %21 = vector.broadcast %20 : vector<1x1x4xf32> to vector<16x16x4xf32>
    %22 = arith.mulf %17, %21 : vector<16x16x4xf32>
    %23 = arith.addf %16, %22 : vector<16x16x4xf32>
    %24 = vector.extract_strided_slice %8 {offsets = [0, 0, 0], sizes = [16, 16, 4], strides = [1, 1, 1]} : vector<18x16x4xf32> to vector<16x16x4xf32>
    %25 = vector.extract_strided_slice %11 {offsets = [1, 0], sizes = [1, 4], strides = [1, 1]} : vector<9x4xf32> to vector<1x4xf32>
    %26 = vector.shape_cast %25 : vector<1x4xf32> to vector<4xf32>
    %27 = vector.shape_cast %26 : vector<4xf32> to vector<1x1x4xf32>
    %28 = vector.broadcast %27 : vector<1x1x4xf32> to vector<16x16x4xf32>
    %29 = arith.mulf %24, %28 : vector<16x16x4xf32>
    %30 = arith.addf %23, %29 : vector<16x16x4xf32>
    %31 = vector.extract_strided_slice %9 {offsets = [0, 0, 0], sizes = [16, 16, 4], strides = [1, 1, 1]} : vector<18x16x4xf32> to vector<16x16x4xf32>
    %32 = vector.extract_strided_slice %11 {offsets = [2, 0], sizes = [1, 4], strides = [1, 1]} : vector<9x4xf32> to vector<1x4xf32>
    %33 = vector.shape_cast %32 : vector<1x4xf32> to vector<4xf32>
    %34 = vector.shape_cast %33 : vector<4xf32> to vector<1x1x4xf32>
    %35 = vector.broadcast %34 : vector<1x1x4xf32> to vector<16x16x4xf32>
    %36 = arith.mulf %31, %35 : vector<16x16x4xf32>
    %37 = arith.addf %30, %36 : vector<16x16x4xf32>
    %38 = vector.extract_strided_slice %7 {offsets = [1, 0, 0], sizes = [16, 16, 4], strides = [1, 1, 1]} : vector<18x16x4xf32> to vector<16x16x4xf32>
    %39 = vector.extract_strided_slice %11 {offsets = [3, 0], sizes = [1, 4], strides = [1, 1]} : vector<9x4xf32> to vector<1x4xf32>
    %40 = vector.shape_cast %39 : vector<1x4xf32> to vector<4xf32>
    %41 = vector.shape_cast %40 : vector<4xf32> to vector<1x1x4xf32>
    %42 = vector.broadcast %41 : vector<1x1x4xf32> to vector<16x16x4xf32>
    %43 = arith.mulf %38, %42 : vector<16x16x4xf32>
    %44 = arith.addf %37, %43 : vector<16x16x4xf32>
    %45 = vector.extract_strided_slice %8 {offsets = [1, 0, 0], sizes = [16, 16, 4], strides = [1, 1, 1]} : vector<18x16x4xf32> to vector<16x16x4xf32>
    %46 = vector.extract_strided_slice %11 {offsets = [4, 0], sizes = [1, 4], strides = [1, 1]} : vector<9x4xf32> to vector<1x4xf32>
    %47 = vector.shape_cast %46 : vector<1x4xf32> to vector<4xf32>
    %48 = vector.shape_cast %47 : vector<4xf32> to vector<1x1x4xf32>
    %49 = vector.broadcast %48 : vector<1x1x4xf32> to vector<16x16x4xf32>
    %50 = arith.mulf %45, %49 : vector<16x16x4xf32>
    %51 = arith.addf %44, %50 : vector<16x16x4xf32>
    %52 = vector.extract_strided_slice %9 {offsets = [1, 0, 0], sizes = [16, 16, 4], strides = [1, 1, 1]} : vector<18x16x4xf32> to vector<16x16x4xf32>
    %53 = vector.extract_strided_slice %11 {offsets = [5, 0], sizes = [1, 4], strides = [1, 1]} : vector<9x4xf32> to vector<1x4xf32>
    %54 = vector.shape_cast %53 : vector<1x4xf32> to vector<4xf32>
    %55 = vector.shape_cast %54 : vector<4xf32> to vector<1x1x4xf32>
    %56 = vector.broadcast %55 : vector<1x1x4xf32> to vector<16x16x4xf32>
    %57 = arith.mulf %52, %56 : vector<16x16x4xf32>
    %58 = arith.addf %51, %57 : vector<16x16x4xf32>
    %59 = vector.extract_strided_slice %7 {offsets = [2, 0, 0], sizes = [16, 16, 4], strides = [1, 1, 1]} : vector<18x16x4xf32> to vector<16x16x4xf32>
    %60 = vector.extract_strided_slice %11 {offsets = [6, 0], sizes = [1, 4], strides = [1, 1]} : vector<9x4xf32> to vector<1x4xf32>
    %61 = vector.shape_cast %60 : vector<1x4xf32> to vector<4xf32>
    %62 = vector.shape_cast %61 : vector<4xf32> to vector<1x1x4xf32>
    %63 = vector.broadcast %62 : vector<1x1x4xf32> to vector<16x16x4xf32>
    %64 = arith.mulf %59, %63 : vector<16x16x4xf32>
    %65 = arith.addf %58, %64 : vector<16x16x4xf32>
    %66 = vector.extract_strided_slice %8 {offsets = [2, 0, 0], sizes = [16, 16, 4], strides = [1, 1, 1]} : vector<18x16x4xf32> to vector<16x16x4xf32>
    %67 = vector.extract_strided_slice %11 {offsets = [7, 0], sizes = [1, 4], strides = [1, 1]} : vector<9x4xf32> to vector<1x4xf32>
    %68 = vector.shape_cast %67 : vector<1x4xf32> to vector<4xf32>
    %69 = vector.shape_cast %68 : vector<4xf32> to vector<1x1x4xf32>
    %70 = vector.broadcast %69 : vector<1x1x4xf32> to vector<16x16x4xf32>
    %71 = arith.mulf %66, %70 : vector<16x16x4xf32>
    %72 = arith.addf %65, %71 : vector<16x16x4xf32>
    %73 = vector.extract_strided_slice %9 {offsets = [2, 0, 0], sizes = [16, 16, 4], strides = [1, 1, 1]} : vector<18x16x4xf32> to vector<16x16x4xf32>
    %74 = vector.extract_strided_slice %11 {offsets = [8, 0], sizes = [1, 4], strides = [1, 1]} : vector<9x4xf32> to vector<1x4xf32>
    %75 = vector.shape_cast %74 : vector<1x4xf32> to vector<4xf32>
    %76 = vector.shape_cast %75 : vector<4xf32> to vector<1x1x4xf32>
    %77 = vector.broadcast %76 : vector<1x1x4xf32> to vector<16x16x4xf32>
    %78 = arith.mulf %73, %77 : vector<16x16x4xf32>
    %79 = arith.addf %72, %78 : vector<16x16x4xf32>
    %80 = vector.shape_cast %79 : vector<16x16x4xf32> to vector<256x4xf32>
    %81 = arith.truncf %80 : vector<256x4xf32> to vector<256x4xbf16>
    %82 = vector.shape_cast %10 : vector<16x16x4xf32> to vector<256x4xf32>
    %83 = arith.truncf %82 : vector<256x4xf32> to vector<256x4xbf16>
    %c0_15 = arith.constant 0 : index
    %c0_16 = arith.constant 0 : index
    %84 = vector.load %arg7[%c0_15, %c0_16] : memref<4x8xbf16, #tpu.memory_space<vmem>>, vector<4x8xbf16>
    %cst = arith.constant dense<0.000000e+00> : vector<256x8xf32>
    %85 = tpu.matmul %81, %84, %cst {dimension_numbers = #tpu.dot_dimension_numbers<[1], [0], [0], [1], [0, 0, 1, 1], [], []>} : vector<256x4xbf16>, vector<4x8xbf16>, vector<256x8xf32> -> vector<256x8xf32>
    %c0_17 = arith.constant 0 : index
    %c0_18 = arith.constant 0 : index
    %86 = vector.load %arg9[%c0_17, %c0_18] : memref<1x8xf32, #tpu.memory_space<vmem>>, vector<1x8xf32>
    %87 = vector.broadcast %86 : vector<1x8xf32> to vector<256x8xf32>
    %88 = arith.addf %85, %87 : vector<256x8xf32>
    %cst_19 = arith.constant 2.000000e+00 : f32
    %89 = vector.broadcast %cst_19 : f32 to vector<256x8xf32>
    %90 = arith.mulf %89, %88 : vector<256x8xf32>
    %91 = arith.negf %90 : vector<256x8xf32>
    %92 = math.exp %91 : vector<256x8xf32>
    %cst_20 = arith.constant 1.000000e+00 : f32
    %93 = vector.broadcast %cst_20 : f32 to vector<256x8xf32>
    %94 = arith.addf %93, %92 : vector<256x8xf32>
    %95 = arith.divf %93, %94 : vector<256x8xf32>
    %96 = arith.mulf %88, %95 : vector<256x8xf32>
    %c0_21 = arith.constant 0 : index
    %c0_22 = arith.constant 0 : index
    %97 = vector.load %arg8[%c0_21, %c0_22] : memref<4x8xbf16, #tpu.memory_space<vmem>>, vector<4x8xbf16>
    %cst_23 = arith.constant dense<0.000000e+00> : vector<256x8xf32>
    %98 = tpu.matmul %83, %97, %cst_23 {dimension_numbers = #tpu.dot_dimension_numbers<[1], [0], [0], [1], [0, 0, 1, 1], [], []>} : vector<256x4xbf16>, vector<4x8xbf16>, vector<256x8xf32> -> vector<256x8xf32>
    %c0_24 = arith.constant 0 : index
    %c0_25 = arith.constant 0 : index
    %99 = vector.load %arg10[%c0_24, %c0_25] : memref<1x8xf32, #tpu.memory_space<vmem>>, vector<1x8xf32>
    %100 = vector.broadcast %99 : vector<1x8xf32> to vector<256x8xf32>
    %101 = arith.addf %98, %100 : vector<256x8xf32>
    %102 = arith.addf %96, %101 : vector<256x8xf32>
    %103 = vector.shape_cast %102 : vector<256x8xf32> to vector<16x16x8xf32>
    %c0_26 = arith.constant 0 : index
    %c0_27 = arith.constant 0 : index
    %c0_28 = arith.constant 0 : index
    %c0_29 = arith.constant 0 : index
    %104 = vector.load %arg11[%c0_26, %c0_27, %c0_28, %c0_29] : memref<1x16x16x8xf32, #tpu.memory_space<vmem>>, vector<1x16x16x8xf32>
    %105 = vector.shape_cast %104 : vector<1x16x16x8xf32> to vector<16x16x8xf32>
    %106 = vector.shape_cast %103 : vector<16x16x8xf32> to vector<1x16x16x8xf32>
    tpu.vector_store %arg11[%c0_26, %c0_27, %c0_28, %c0_29], %106 {strides = array<i32>} : memref<1x16x16x8xf32, #tpu.memory_space<vmem>>, vector<1x16x16x8xf32>,
    return
  }
  func.func @transform_0(%arg0: i32, %arg1: i32) -> (i32, i32, i32, i32) {
    %c0_i32 = arith.constant 0 : i32
    %c0_i32_0 = arith.constant 0 : i32
    %c0_i32_1 = arith.constant 0 : i32
    return %arg0, %arg1, %c0_i32, %c0_i32_0 : i32, i32, i32, i32
  }
  func.func @transform_1(%arg0: i32, %arg1: i32) -> (i32, i32, i32, i32) {
    %c1_i32 = arith.constant 1 : i32
    %0 = arith.addi %arg1, %c1_i32 : i32
    %c16_i32 = arith.constant 16 : i32
    %1 = arith.muli %0, %c16_i32 : i32
    %c0_i32 = arith.constant 0 : i32
    %c0_i32_0 = arith.constant 0 : i32
    %c0_i32_1 = arith.constant 0 : i32
    return %arg0, %1, %c0_i32, %c0_i32_0 : i32, i32, i32, i32
  }
  func.func @transform_2(%arg0: i32, %arg1: i32) -> (i32, i32, i32, i32) {
    %c1_i32 = arith.constant 1 : i32
    %0 = arith.addi %arg1, %c1_i32 : i32
    %c16_i32 = arith.constant 16 : i32
    %1 = arith.muli %0, %c16_i32 : i32
    %c1_i32_0 = arith.constant 1 : i32
    %2 = arith.addi %1, %c1_i32_0 : i32
    %c0_i32 = arith.constant 0 : i32
    %c0_i32_1 = arith.constant 0 : i32
    %c0_i32_2 = arith.constant 0 : i32
    return %arg0, %2, %c0_i32, %c0_i32_1 : i32, i32, i32, i32
  }
  func.func @transform_3(%arg0: i32, %arg1: i32) -> (i32, i32) {
    %c0_i32 = arith.constant 0 : i32
    %c0_i32_0 = arith.constant 0 : i32
    %c0_i32_1 = arith.constant 0 : i32
    return %c0_i32, %c0_i32_0 : i32, i32
  }
  func.func @transform_4(%arg0: i32, %arg1: i32) -> (i32, i32) {
    %c0_i32 = arith.constant 0 : i32
    %c0_i32_0 = arith.constant 0 : i32
    %c0_i32_1 = arith.constant 0 : i32
    return %c0_i32, %c0_i32_0 : i32, i32
  }
  func.func @transform_5(%arg0: i32, %arg1: i32) -> (i32, i32) {
    %c0_i32 = arith.constant 0 : i32
    %c0_i32_0 = arith.constant 0 : i32
    %c0_i32_1 = arith.constant 0 : i32
    return %c0_i32, %c0_i32_0 : i32, i32
  }
  func.func @transform_6(%arg0: i32, %arg1: i32) -> (i32, i32) {
    %c0_i32 = arith.constant 0 : i32
    %c0_i32_0 = arith.constant 0 : i32
    %c0_i32_1 = arith.constant 0 : i32
    return %c0_i32, %c0_i32_0 : i32, i32
  }
  func.func @transform_7(%arg0: i32, %arg1: i32) -> (i32, i32) {
    %c0_i32 = arith.constant 0 : i32
    %c0_i32_0 = arith.constant 0 : i32
    %c0_i32_1 = arith.constant 0 : i32
    return %c0_i32, %c0_i32_0 : i32, i32
  }
  func.func @transform_8(%arg0: i32, %arg1: i32) -> (i32, i32) {
    %c0_i32 = arith.constant 0 : i32
    %c0_i32_0 = arith.constant 0 : i32
    %c0_i32_1 = arith.constant 0 : i32
    return %c0_i32, %c0_i32_0 : i32, i32
  }
  func.func @transform_9(%arg0: i32, %arg1: i32) -> (i32, i32, i32, i32) {
    %c0_i32 = arith.constant 0 : i32
    %c0_i32_0 = arith.constant 0 : i32
    %c0_i32_1 = arith.constant 0 : i32
    return %arg0, %arg1, %c0_i32, %c0_i32_0 : i32, i32, i32, i32
  }
}

</mosaic_0001>

<llo_original>
// kernel: conv_block_forward.1
$region0: #{conv_block_forward.1}
  #allocation0 [shape = 'u32[]', space=smem, size = 0x4, offset = 0x4, fixed_abs, tag = 'smem constant byte address 0x4 - core index']
  #allocation1 [shape = 'u32[144,128]{1,0:T(1,128)}', space=vmem, size = 0x12000, scoped, tag = 'internal scratch']
  %s0 = inlined_call_operand.vmem [shape: f32[2,18,18,4], index: 0, kind: input, shape index: {}, may-alias: {0,1,2}]
  %s1 = inlined_call_operand.vmem [shape: f32[2,18,18,4], index: 1, kind: input, shape index: {}, may-alias: {0,1,2}]
  %s2 = inlined_call_operand.vmem [shape: f32[2,18,18,4], index: 2, kind: input, shape index: {}, may-alias: {0,1,2}]
  %s3 = inlined_call_operand.vmem [shape: f32[9,4], index: 3, kind: input, shape index: {}]
  %s4 = inlined_call_operand.vmem [shape: f32[1,4], index: 4, kind: input, shape index: {}]
  %s5 = inlined_call_operand.vmem [shape: bf16[4,8], index: 5, kind: input, shape index: {}]
  %s6 = inlined_call_operand.vmem [shape: bf16[4,8], index: 6, kind: input, shape index: {}]
  %s7 = inlined_call_operand.vmem [shape: f32[1,8], index: 7, kind: input, shape index: {}]
  %s8 = inlined_call_operand.vmem [shape: f32[1,8], index: 8, kind: input, shape index: {}]
  %s9 = inlined_call_operand.vmem [shape: f32[2,16,16,8], index: 9, kind: output, shape index: {}]
  %s10 = sld [smem:[#allocation0]]
  $region69: #{conv_block_forward.1} parent=0
    _
  %s12 = ssub.s32 1, %s10
  %s13 = scalar_select 0, %s12, %s10
  loop: start=0, step=1, limit=4
  $region2: #{conv_block_forward.1} parent=0 // loop_pre_header
    _
  $region3: #{conv_block_forward.1} parent=0 // loop_header
    %s15 = sphi 0, %s19
    %p16 = scmp.ge.s32.totalorder %s15, 4
    %s22 = sphi 0, %s34
    %s23 = sphi 0, %s30
    %s24 = sphi 0, %s22
    %s25 = sphi 0, %s23
    %s26 = sphi 0, %s24
    %s27 = sphi 0, %s25
    %s39 = sphi 0, %s41
    %s42 = sphi 0, %s39
    %s43 = sphi 0, %s42
    %s59 = sphi 0, %s43
    %s71 = sphi 0, %s73
    %s74 = sphi 0, %s71
    %s75 = sphi 0, %s74
    %s91 = sphi 0, %s75
    %s105 = sphi 0, %s107
    %s108 = sphi 0, %s105
    %s109 = sphi 0, %s108
    %s125 = sphi 0, %s109
    %s129 = sphi 0, %s129
    %s131 = sphi 0, %s129
    %s132 = sphi 0, %s131
    %s146 = sphi 0, %s132
    %s150 = sphi 0, %s150
    %s152 = sphi 0, %s150
    %s153 = sphi 0, %s152
    %s167 = sphi 0, %s153
    %s171 = sphi 0, %s171
    %s173 = sphi 0, %s171
    %s174 = sphi 0, %s173
    %s188 = sphi 0, %s174
    %s192 = sphi 0, %s192
    %s194 = sphi 0, %s192
    %s195 = sphi 0, %s194
    %s209 = sphi 0, %s195
    %s213 = sphi 0, %s213
    %s215 = sphi 0, %s213
    %s216 = sphi 0, %s215
    %s230 = sphi 0, %s216
    %s234 = sphi 0, %s234
    %s236 = sphi 0, %s234
    %s237 = sphi 0, %s236
    %s251 = sphi 0, %s237
    %s259 = sphi 0, %s261
    %s262 = sphi 0, %s259
    %s263 = sphi 0, %s262
    %s279 = sphi 0, %s263
  $region4: #{conv_block_forward.1} parent=0 // loop_header_branch
    %18 = sbr.rel (%p16) target = $region8
  $region5: #{conv_block_forward.1} parent=0 // loop_body
    %s20 = ssub.s32 %s15, 1
    %s21 = ssub.s32 %s15, 2
    %s28 = sadd.s32 1, %s23
    %p29 = scmp.ge.s32.totalorder %s28, 1
    %s30 = scalar_select %p29, 0, %s28
    %s31 = sadd.s32 1, %s22
    %s32 = scalar_select %p29, %s31, %s22
    %p33 = scmp.ge.s32.totalorder %s32, 2
    %s34 = scalar_select %p33, 0, %s32
    %s35 = ssub.s32 %s22, %s34
    %s36 = ssub.s32 %s23, %s30
    %s37 = sor.u32 %s35, %s36
    %p38 = scmp.eq.s32.totalorder %s37, 0
    %s40 = sadd.s32 %s39, 1
    %s41 = scalar_select %p38, %s39, %s40
    %p44 = pneg %p38
    %p45 = scmp.eq.s32.totalorder %s15, 1
    %p46 = por %p44, %p45
    %p47 = scmp.ne.s32.totalorder %s39, %s42
    %p48 = scmp.eq.s32.totalorder %s15, 0
    %p49 = por %p47, %p48
    %p50 = scmp.ne.s32.totalorder %s39, %s42
    %p51 = scmp.eq.s32.totalorder %s20, 1
    %p52 = por %p50, %p51
    %p53 = scmp.ne.s32.totalorder %s42, %s43
    %p54 = scmp.eq.s32.totalorder %s20, 0
    %p55 = por %p53, %p54
    %p56 = scmp.ne.s32.totalorder %s42, %s43
    %p57 = scmp.eq.s32.totalorder %s21, 1
    %p58 = por %p56, %p57
    %p60 = scmp.ne.s32.totalorder %s43, %s59
    %p61 = scmp.eq.s32.totalorder %s21, 0
    %p62 = por %p60, %p61
    %s63 = sadd.s32 %s23, 1
    %s64 = smul.u32 %s63, 16
    %s65 = sadd.s32 %s30, 1
    %s66 = smul.u32 %s65, 16
    %s67 = ssub.s32 %s22, %s34
    %s68 = ssub.s32 %s64, %s66
    %s69 = sor.u32 %s67, %s68
    %p70 = scmp.eq.s32.totalorder %s69, 0
    %s72 = sadd.s32 %s71, 1
    %s73 = scalar_select %p70, %s71, %s72
    %p76 = pneg %p70
    %p77 = scmp.eq.s32.totalorder %s15, 1
    %p78 = por %p76, %p77
    %p79 = scmp.ne.s32.totalorder %s71, %s74
    %p80 = scmp.eq.s32.totalorder %s15, 0
    %p81 = por %p79, %p80
    %p82 = scmp.ne.s32.totalorder %s71, %s74
    %p83 = scmp.eq.s32.totalorder %s20, 1
    %p84 = por %p82, %p83
    %p85 = scmp.ne.s32.totalorder %s74, %s75
    %p86 = scmp.eq.s32.totalorder %s20, 0
    %p87 = por %p85, %p86
    %p88 = scmp.ne.s32.totalorder %s74, %s75
    %p89 = scmp.eq.s32.totalorder %s21, 1
    %p90 = por %p88, %p89
    %p92 = scmp.ne.s32.totalorder %s75, %s91
    %p93 = scmp.eq.s32.totalorder %s21, 0
    %p94 = por %p92, %p93
    %s95 = sadd.s32 %s23, 1
    %s96 = smul.u32 %s95, 16
    %s97 = sadd.s32 %s96, 1
    %s98 = sadd.s32 %s30, 1
    %s99 = smul.u32 %s98, 16
    %s100 = sadd.s32 %s99, 1
    %s101 = ssub.s32 %s22, %s34
    %s102 = ssub.s32 %s97, %s100
    %s103 = sor.u32 %s101, %s102
    %p104 = scmp.eq.s32.totalorder %s103, 0
    %s106 = sadd.s32 %s105, 1
    %s107 = scalar_select %p104, %s105, %s106
    %p110 = pneg %p104
    %p111 = scmp.eq.s32.totalorder %s15, 1
    %p112 = por %p110, %p111
    %p113 = scmp.ne.s32.totalorder %s105, %s108
    %p114 = scmp.eq.s32.totalorder %s15, 0
    %p115 = por %p113, %p114
    %p116 = scmp.ne.s32.totalorder %s105, %s108
    %p117 = scmp.eq.s32.totalorder %s20, 1
    %p118 = por %p116, %p117
    %p119 = scmp.ne.s32.totalorder %s108, %s109
    %p120 = scmp.eq.s32.totalorder %s20, 0
    %p121 = por %p119, %p120
    %p122 = scmp.ne.s32.totalorder %s108, %s109
    %p123 = scmp.eq.s32.totalorder %s21, 1
    %p124 = por %p122, %p123
    %p126 = scmp.ne.s32.totalorder %s109, %s125
    %p127 = scmp.eq.s32.totalorder %s21, 0
    %p128 = por %p126, %p127
    %s130 = sadd.s32 %s129, 1
    %p133 = scmp.eq.s32.totalorder %s15, 1
    %p134 = scmp.ne.s32.totalorder %s129, %s131
    %p135 = scmp.eq.s32.totalorder %s15, 0
    %p136 = por %p134, %p135
    %p137 = scmp.ne.s32.totalorder %s129, %s131
    %p138 = scmp.eq.s32.totalorder %s20, 1
    %p139 = por %p137, %p138
    %p140 = scmp.ne.s32.totalorder %s131, %s132
    %p141 = scmp.eq.s32.totalorder %s20, 0
    %p142 = por %p140, %p141
    %p143 = scmp.ne.s32.totalorder %s131, %s132
    %p144 = scmp.eq.s32.totalorder %s21, 1
    %p145 = por %p143, %p144
    %p147 = scmp.ne.s32.totalorder %s132, %s146
    %p148 = scmp.eq.s32.totalorder %s21, 0
    %p149 = por %p147, %p148
    %s151 = sadd.s32 %s150, 1
    %p154 = scmp.eq.s32.totalorder %s15, 1
    %p155 = scmp.ne.s32.totalorder %s150, %s152
    %p156 = scmp.eq.s32.totalorder %s15, 0
    %p157 = por %p155, %p156
    %p158 = scmp.ne.s32.totalorder %s150, %s152
    %p159 = scmp.eq.s32.totalorder %s20, 1
    %p160 = por %p158, %p159
    %p161 = scmp.ne.s32.totalorder %s152, %s153
    %p162 = scmp.eq.s32.totalorder %s20, 0
    %p163 = por %p161, %p162
    %p164 = scmp.ne.s32.totalorder %s152, %s153
    %p165 = scmp.eq.s32.totalorder %s21, 1
    %p166 = por %p164, %p165
    %p168 = scmp.ne.s32.totalorder %s153, %s167
    %p169 = scmp.eq.s32.totalorder %s21, 0
    %p170 = por %p168, %p169
    %s172 = sadd.s32 %s171, 1
    %p175 = scmp.eq.s32.totalorder %s15, 1
    %p176 = scmp.ne.s32.totalorder %s171, %s173
    %p177 = scmp.eq.s32.totalorder %s15, 0
    %p178 = por %p176, %p177
    %p179 = scmp.ne.s32.totalorder %s171, %s173
    %p180 = scmp.eq.s32.totalorder %s20, 1
    %p181 = por %p179, %p180
    %p182 = scmp.ne.s32.totalorder %s173, %s174
    %p183 = scmp.eq.s32.totalorder %s20, 0
    %p184 = por %p182, %p183
    %p185 = scmp.ne.s32.totalorder %s173, %s174
    %p186 = scmp.eq.s32.totalorder %s21, 1
    %p187 = por %p185, %p186
    %p189 = scmp.ne.s32.totalorder %s174, %s188
    %p190 = scmp.eq.s32.totalorder %s21, 0
    %p191 = por %p189, %p190
    %s193 = sadd.s32 %s192, 1
    %p196 = scmp.eq.s32.totalorder %s15, 1
    %p197 = scmp.ne.s32.totalorder %s192, %s194
    %p198 = scmp.eq.s32.totalorder %s15, 0
    %p199 = por %p197, %p198
    %p200 = scmp.ne.s32.totalorder %s192, %s194
    %p201 = scmp.eq.s32.totalorder %s20, 1
    %p202 = por %p200, %p201
    %p203 = scmp.ne.s32.totalorder %s194, %s195
    %p204 = scmp.eq.s32.totalorder %s20, 0
    %p205 = por %p203, %p204
    %p206 = scmp.ne.s32.totalorder %s194, %s195
    %p207 = scmp.eq.s32.totalorder %s21, 1
    %p208 = por %p206, %p207
    %p210 = scmp.ne.s32.totalorder %s195, %s209
    %p211 = scmp.eq.s32.totalorder %s21, 0
    %p212 = por %p210, %p211
    %s214 = sadd.s32 %s213, 1
    %p217 = scmp.eq.s32.totalorder %s15, 1
    %p218 = scmp.ne.s32.totalorder %s213, %s215
    %p219 = scmp.eq.s32.totalorder %s15, 0
    %p220 = por %p218, %p219
    %p221 = scmp.ne.s32.totalorder %s213, %s215
    %p222 = scmp.eq.s32.totalorder %s20, 1
    %p223 = por %p221, %p222
    %p224 = scmp.ne.s32.totalorder %s215, %s216
    %p225 = scmp.eq.s32.totalorder %s20, 0
    %p226 = por %p224, %p225
    %p227 = scmp.ne.s32.totalorder %s215, %s216
    %p228 = scmp.eq.s32.totalorder %s21, 1
    %p229 = por %p227, %p228
    %p231 = scmp.ne.s32.totalorder %s216, %s230
    %p232 = scmp.eq.s32.totalorder %s21, 0
    %p233 = por %p231, %p232
    %s235 = sadd.s32 %s234, 1
    %p238 = scmp.eq.s32.totalorder %s15, 1
    %p239 = scmp.ne.s32.totalorder %s234, %s236
    %p240 = scmp.eq.s32.totalorder %s15, 0
    %p241 = por %p239, %p240
    %p242 = scmp.ne.s32.totalorder %s234, %s236
    %p243 = scmp.eq.s32.totalorder %s20, 1
    %p244 = por %p242, %p243
    %p245 = scmp.ne.s32.totalorder %s236, %s237
    %p246 = scmp.eq.s32.totalorder %s20, 0
    %p247 = por %p245, %p246
    %p248 = scmp.ne.s32.totalorder %s236, %s237
    %p249 = scmp.eq.s32.totalorder %s21, 1
    %p250 = por %p248, %p249
    %p252 = scmp.ne.s32.totalorder %s237, %s251
    %p253 = scmp.eq.s32.totalorder %s21, 0
    %p254 = por %p252, %p253
    %s255 = ssub.s32 %s22, %s34
    %s256 = ssub.s32 %s23, %s30
    %s257 = sor.u32 %s255, %s256
    %p258 = scmp.eq.s32.totalorder %s257, 0
    %s260 = sadd.s32 %s259, 1
    %s261 = scalar_select %p258, %s259, %s260
    %p264 = pneg %p258
    %p265 = scmp.eq.s32.totalorder %s15, 1
    %p266 = por %p264, %p265
    %p267 = scmp.ne.s32.totalorder %s259, %s262
    %p268 = scmp.eq.s32.totalorder %s15, 0
    %p269 = por %p267, %p268
    %p270 = scmp.ne.s32.totalorder %s259, %s262
    %p271 = scmp.eq.s32.totalorder %s20, 1
    %p272 = por %p270, %p271
    %p273 = scmp.ne.s32.totalorder %s262, %s263
    %p274 = scmp.eq.s32.totalorder %s20, 0
    %p275 = por %p273, %p274
    %p276 = scmp.ne.s32.totalorder %s262, %s263
    %p277 = scmp.eq.s32.totalorder %s21, 1
    %p278 = por %p276, %p277
    %p280 = scmp.ne.s32.totalorder %s263, %s279
    %p281 = scmp.eq.s32.totalorder %s21, 0
    %p282 = por %p280, %p281
    %p283 = scmp.le.s32.totalorder 1, %s15
    %p284 = scmp.lt.s32.totalorder %s15, 3
    %p285 = pnand %p283, %p284
    %p286 = pneg %p285
    // Predicated region
    $region9: #{conv_block_forward.1} parent=5 // pred_check
      _
    $region10: #{conv_block_forward.1} parent=5 // pred_check_branch
      %288 = sbr.rel (%p285) target = $region12
    $region11: #{conv_block_forward.1} parent=5 // pred_region
      %s289 = ssub.s32 %s15, 1
      // Predicated region
      $region13: #{conv_block_forward.1} parent=11 // pred_check
        %p290 = pneg %p142
      $region14: #{conv_block_forward.1} parent=11 // pred_check_branch
        %292 = sbr.rel (%p290) target = $region16
      $region15: #{conv_block_forward.1} parent=11 // pred_region
        _
      $region16: #{conv_block_forward.1} parent=11 // pred_fallthru
        _
      // Predicated region
      $region17: #{conv_block_forward.1} parent=11 // pred_check
        %p293 = pneg %p163
      $region18: #{conv_block_forward.1} parent=11 // pred_check_branch
        %295 = sbr.rel (%p293) target = $region20
      $region19: #{conv_block_forward.1} parent=11 // pred_region
        _
      $region20: #{conv_block_forward.1} parent=11 // pred_fallthru
        _
      // Predicated region
      $region21: #{conv_block_forward.1} parent=11 // pred_check
        %p296 = pneg %p184
      $region22: #{conv_block_forward.1} parent=11 // pred_check_branch
        %298 = sbr.rel (%p296) target = $region24
      $region23: #{conv_block_forward.1} parent=11 // pred_region
        _
      $region24: #{conv_block_forward.1} parent=11 // pred_fallthru
        _
      // Predicated region
      $region25: #{conv_block_forward.1} parent=11 // pred_check
        %p299 = pneg %p205
      $region26: #{conv_block_forward.1} parent=11 // pred_check_branch
        %301 = sbr.rel (%p299) target = $region28
      $region27: #{conv_block_forward.1} parent=11 // pred_region
        _
      $region28: #{conv_block_forward.1} parent=11 // pred_fallthru
        _
      // Predicated region
      $region29: #{conv_block_forward.1} parent=11 // pred_check
        %p302 = pneg %p226
      $region30: #{conv_block_forward.1} parent=11 // pred_check_branch
        %304 = sbr.rel (%p302) target = $region32
      $region31: #{conv_block_forward.1} parent=11 // pred_region
        _
      $region32: #{conv_block_forward.1} parent=11 // pred_fallthru
        _
      // Predicated region
      $region33: #{conv_block_forward.1} parent=11 // pred_check
        %p305 = pneg %p247
      $region34: #{conv_block_forward.1} parent=11 // pred_check_branch
        %307 = sbr.rel (%p305) target = $region36
      $region35: #{conv_block_forward.1} parent=11 // pred_region
        _
      $region36: #{conv_block_forward.1} parent=11 // pred_fallthru
        _
    $region12: #{conv_block_forward.1} parent=5 // pred_fallthru
      _
    %p308 = scmp.lt.s32.totalorder %s15, 2
    // Predicated region
    $region37: #{conv_block_forward.1} parent=5 // pred_check
      %p309 = pneg %p308
    $region38: #{conv_block_forward.1} parent=5 // pred_check_branch
      %311 = sbr.rel (%p309) target = $region40
    $region39: #{conv_block_forward.1} parent=5 // pred_region
      // Predicated region
      $region41: #{conv_block_forward.1} parent=39 // pred_check
        %p312 = pneg %p49
      $region42: #{conv_block_forward.1} parent=39 // pred_check_branch
        %314 = sbr.rel (%p312) target = $region44
      $region43: #{conv_block_forward.1} parent=39 // pred_region
        %s315 = smul.u32 16, %s23
        %s316 = ssub.s32 18, %s315
        %p317 = scmp.lt.s32.totalorder %s316, 16
        %s318 = scalar_select %p317, %s316, 16
        %s319 = smul.u32 128, %s318
        %s320 = smul.u32 %s319, 3
        %p321 = scmp.lt.s32.totalorder %s22, 1
        %s322 = scalar_select %p321, %s22, 1
        %p323 = scmp.lt.s32.totalorder %s315, 17
        %s324 = scalar_select %p323, %s315, 17
        %s325 = smul.addr %s324, 3
        %s326 = smul.addr %s322, 54
        %s327 = sadd.s32 %s325, %s326
        %s328 = smul.addr %s327, 8
        %s329 = scalar_lea.vmem %s0, %s328
        %s330 = smul.u32 16, %s23
        %s331 = ssub.s32 18, %s330
        %p332 = scmp.lt.s32.totalorder %s331, 16
        %s333 = scalar_select %p332, %s331, 16
        %s334 = smul.u32 128, %s333
        %s335 = smul.u32 %s334, 3
      $region44: #{conv_block_forward.1} parent=39 // pred_fallthru
        _
      // Predicated region
      $region45: #{conv_block_forward.1} parent=39 // pred_check
        %p336 = pneg %p81
      $region46: #{conv_block_forward.1} parent=39 // pred_check_branch
        %338 = sbr.rel (%p336) target = $region48
      $region47: #{conv_block_forward.1} parent=39 // pred_region
        %s339 = sadd.s32 %s23, 1
        %s340 = smul.u32 %s339, 16
        %p341 = scmp.lt.s32.totalorder %s22, 1
        %s342 = scalar_select %p341, %s22, 1
        %p343 = scmp.lt.s32.totalorder %s340, 17
        %s344 = scalar_select %p343, %s340, 17
        %s345 = smul.addr %s344, 3
        %s346 = smul.addr %s342, 54
        %s347 = sadd.s32 %s345, %s346
        %s348 = smul.addr %s347, 8
        %s349 = scalar_lea.vmem %s1, %s348
        %s350 = sadd.s32 %s23, 1
        %s351 = smul.u32 %s350, 16
      $region48: #{conv_block_forward.1} parent=39 // pred_fallthru
        _
      // Predicated region
      $region49: #{conv_block_forward.1} parent=39 // pred_check
        %p352 = pneg %p115
      $region50: #{conv_block_forward.1} parent=39 // pred_check_branch
        %354 = sbr.rel (%p352) target = $region52
      $region51: #{conv_block_forward.1} parent=39 // pred_region
        %s355 = sadd.s32 %s23, 1
        %s356 = smul.u32 %s355, 16
        %s357 = sadd.s32 %s356, 1
        %p358 = scmp.lt.s32.totalorder %s22, 1
        %s359 = scalar_select %p358, %s22, 1
        %p360 = scmp.lt.s32.totalorder %s357, 17
        %s361 = scalar_select %p360, %s357, 17
        %s362 = smul.addr %s361, 3
        %s363 = smul.addr %s359, 54
        %s364 = sadd.s32 %s362, %s363
        %s365 = smul.addr %s364, 8
        %s366 = scalar_lea.vmem %s2, %s365
        %s367 = sadd.s32 %s23, 1
        %s368 = smul.u32 %s367, 16
        %s369 = sadd.s32 %s368, 1
      $region52: #{conv_block_forward.1} parent=39 // pred_fallthru
        _
    $region40: #{conv_block_forward.1} parent=5 // pred_fallthru
      _
    %p370 = scmp.le.s32.totalorder 1, %s15
    %p371 = scmp.lt.s32.totalorder %s15, 3
    %p372 = pnand %p370, %p371
    %p373 = pneg %p372
    // Predicated region
    $region53: #{conv_block_forward.1} parent=5 // pred_check
      _
    $region54: #{conv_block_forward.1} parent=5 // pred_check_branch
      %375 = sbr.rel (%p372) target = $region56
    $region55: #{conv_block_forward.1} parent=5 // pred_region
      %s376 = ssub.s32 %s15, 1
      %s377 = smul.u32 16, %s25
      %s378 = ssub.s32 18, %s377
      %p379 = scmp.lt.s32.totalorder %s378, 16
      %s380 = scalar_select %p379, %s378, 16
      %s381 = smul.u32 128, %s380
      %s382 = smul.u32 %s381, 3
      %p383 = scmp.lt.s32.totalorder %s24, 1
      %s384 = scalar_select %p383, %s24, 1
      %p385 = scmp.lt.s32.totalorder %s377, 17
      %s386 = scalar_select %p385, %s377, 17
      %s387 = smul.addr %s386, 3
      %s388 = smul.addr %s384, 54
      %s389 = sadd.s32 %s387, %s388
      %s390 = smul.addr %s389, 8
      %s391 = scalar_lea.vmem %s0, %s390
      %p392 = pneg %p55
      %p393 = pneg %p52
      %s394 = sadd.s32 %s25, 1
      %s395 = smul.u32 %s394, 16
      %p396 = scmp.lt.s32.totalorder %s24, 1
      %s397 = scalar_select %p396, %s24, 1
      %p398 = scmp.lt.s32.totalorder %s395, 17
      %s399 = scalar_select %p398, %s395, 17
      %s400 = smul.addr %s399, 3
      %s401 = smul.addr %s397, 54
      %s402 = sadd.s32 %s400, %s401
      %s403 = smul.addr %s402, 8
      %s404 = scalar_lea.vmem %s1, %s403
      %p405 = pneg %p87
      %p406 = pneg %p84
      %s407 = sadd.s32 %s25, 1
      %s408 = smul.u32 %s407, 16
      %s409 = sadd.s32 %s408, 1
      %p410 = scmp.lt.s32.totalorder %s24, 1
      %s411 = scalar_select %p410, %s24, 1
      %p412 = scmp.lt.s32.totalorder %s409, 17
      %s413 = scalar_select %p412, %s409, 17
      %s414 = smul.addr %s413, 3
      %s415 = smul.addr %s411, 54
      %s416 = sadd.s32 %s414, %s415
      %s417 = smul.addr %s416, 8
      %s418 = scalar_lea.vmem %s2, %s417
      %p419 = pneg %p121
      %p420 = pneg %p118
      %p421 = pneg %p142
      %p422 = pneg %p139
      %p423 = pneg %p163
      %p424 = pneg %p160
      %p425 = pneg %p184
      %p426 = pneg %p181
      %p427 = pneg %p205
      %p428 = pneg %p202
      %p429 = pneg %p226
      %p430 = pneg %p223
      %p431 = pneg %p247
      %p432 = pneg %p244
      %p433 = pneg %p275
      %p434 = pneg %p272
      %s435 = smul.u32 16, %s25
      %p436 = scmp.lt.s32.totalorder %s24, 1
      %s437 = scalar_select %p436, %s24, 1
      %p438 = scmp.lt.s32.totalorder %s435, 15
      %s439 = scalar_select %p438, %s435, 15
      %s440 = smul.addr %s439, 2
      %s441 = smul.addr %s437, 32
      %s442 = sadd.s32 %s440, %s441
      %s443 = smul.addr %s442, 8
      %s444 = scalar_lea.vmem %s9, %s443
      %s445 = smul.u32 16, %s25
      %s446 = ssub.s32 18, %s445
      %p447 = scmp.lt.s32.totalorder %s446, 16
      %s448 = scalar_select %p447, %s446, 16
      %s449 = smul.u32 128, %s448
      %s450 = smul.u32 %s449, 3
      %p451 = scmp.lt.s32.totalorder %s24, 1
      %s452 = scalar_select %p451, %s24, 1
      %p453 = scmp.lt.s32.totalorder %s445, 17
      %s454 = scalar_select %p453, %s445, 17
      %s455 = smul.addr %s454, 3
      %s456 = smul.addr %s452, 54
      %s457 = sadd.s32 %s455, %s456
      %s458 = smul.addr %s457, 8
      %s459 = scalar_lea.vmem %s0, %s458
      %s460 = smul.u32 16, %s25
      %s461 = ssub.s32 18, %s460
      %p462 = scmp.lt.s32.totalorder %s461, 16
      %s463 = scalar_select %p462, %s461, 16
      %s464 = smul.u32 128, %s463
      %s465 = smul.u32 %s464, 3
      %s466 = sadd.s32 %s25, 1
      %s467 = smul.u32 %s466, 16
      %p468 = scmp.lt.s32.totalorder %s24, 1
      %s469 = scalar_select %p468, %s24, 1
      %p470 = scmp.lt.s32.totalorder %s467, 17
      %s471 = scalar_select %p470, %s467, 17
      %s472 = smul.addr %s471, 3
      %s473 = smul.addr %s469, 54
      %s474 = sadd.s32 %s472, %s473
      %s475 = smul.addr %s474, 8
      %s476 = scalar_lea.vmem %s1, %s475
      %s477 = sadd.s32 %s25, 1
      %s478 = smul.u32 %s477, 16
      %s479 = sadd.s32 %s25, 1
      %s480 = smul.u32 %s479, 16
      %s481 = sadd.s32 %s480, 1
      %p482 = scmp.lt.s32.totalorder %s24, 1
      %s483 = scalar_select %p482, %s24, 1
      %p484 = scmp.lt.s32.totalorder %s481, 17
      %s485 = scalar_select %p484, %s481, 17
      %s486 = smul.addr %s485, 3
      %s487 = smul.addr %s483, 54
      %s488 = sadd.s32 %s486, %s487
      %s489 = smul.addr %s488, 8
      %s490 = scalar_lea.vmem %s2, %s489
      %s491 = sadd.s32 %s25, 1
      %s492 = smul.u32 %s491, 16
      %s493 = sadd.s32 %s492, 1
      %s494 = smul.u32 16, %s25
      %p495 = scmp.lt.s32.totalorder %s24, 1
      %s496 = scalar_select %p495, %s24, 1
      %p497 = scmp.lt.s32.totalorder %s494, 15
      %s498 = scalar_select %p497, %s494, 15
      %s499 = smul.addr %s498, 2
      %s500 = smul.addr %s496, 32
      %s501 = sadd.s32 %s499, %s500
      %s502 = smul.addr %s501, 8
      %s503 = scalar_lea.vmem %s9, %s502
      %s504 = smul.u32 16, %s25
      %v506 = vld [vmem:[%s459] sm:$0xff]
      %v507 = vld [vmem:[%s459 + $0x8] sm:$0xff]
      %v508 = vld [vmem:[%s459 + $0x10] sm:$0x3]
      %v509 = vld [vmem:[%s459 + $0x18] sm:$0xff]
      %v510 = vld [vmem:[%s459 + $0x20] sm:$0xff]
      %v511 = vld [vmem:[%s459 + $0x28] sm:$0x3]
      %v512 = vld [vmem:[%s459 + $0x30] sm:$0xff]
      %v513 = vld [vmem:[%s459 + $0x38] sm:$0xff]
      %v514 = vld [vmem:[%s459 + $0x40] sm:$0x3]
      %v515 = vld [vmem:[%s459 + $0x48] sm:$0xff]
      %v516 = vld [vmem:[%s459 + $0x50] sm:$0xff]
      %v517 = vld [vmem:[%s459 + $0x58] sm:$0x3]
      %v518 = vld [vmem:[%s459 + $0x60] sm:$0xff]
      %v519 = vld [vmem:[%s459 + $0x68] sm:$0xff]
      %v520 = vld [vmem:[%s459 + $0x70] sm:$0x3]
      %v521 = vld [vmem:[%s459 + $0x78] sm:$0xff]
      %v522 = vld [vmem:[%s459 + $0x80] sm:$0xff]
      %v523 = vld [vmem:[%s459 + $0x88] sm:$0x3]
      %v524 = vld [vmem:[%s459 + $0x90] sm:$0xff]
      %v525 = vld [vmem:[%s459 + $0x98] sm:$0xff]
      %v526 = vld [vmem:[%s459 + $0xa0] sm:$0x3]
      %v527 = vld [vmem:[%s459 + $0xa8] sm:$0xff]
      %v528 = vld [vmem:[%s459 + $0xb0] sm:$0xff]
      %v529 = vld [vmem:[%s459 + $0xb8] sm:$0x3]
      %v530 = vld [vmem:[%s459 + $0xc0] sm:$0xff]
      %v531 = vld [vmem:[%s459 + $0xc8] sm:$0xff]
      %v532 = vld [vmem:[%s459 + $0xd0] sm:$0x3]
      %v533 = vld [vmem:[%s459 + $0xd8] sm:$0xff]
      %v534 = vld [vmem:[%s459 + $0xe0] sm:$0xff]
      %v535 = vld [vmem:[%s459 + $0xe8] sm:$0x3]
      %v536 = vld [vmem:[%s459 + $0xf0] sm:$0xff]
      %v537 = vld [vmem:[%s459 + $0xf8] sm:$0xff]
      %v538 = vld [vmem:[%s459 + $0x100] sm:$0x3]
      %v539 = vld [vmem:[%s459 + $0x108] sm:$0xff]
      %v540 = vld [vmem:[%s459 + $0x110] sm:$0xff]
      %v541 = vld [vmem:[%s459 + $0x118] sm:$0x3]
      %v542 = vld [vmem:[%s459 + $0x120] sm:$0xff]
      %v543 = vld [vmem:[%s459 + $0x128] sm:$0xff]
      %v544 = vld [vmem:[%s459 + $0x130] sm:$0x3]
      %v545 = vld [vmem:[%s459 + $0x138] sm:$0xff]
      %v546 = vld [vmem:[%s459 + $0x140] sm:$0xff]
      %v547 = vld [vmem:[%s459 + $0x148] sm:$0x3]
      %v548 = vld [vmem:[%s459 + $0x150] sm:$0xff]
      %v549 = vld [vmem:[%s459 + $0x158] sm:$0xff]
      %v550 = vld [vmem:[%s459 + $0x160] sm:$0x3]
      %v551 = vld [vmem:[%s459 + $0x168] sm:$0xff]
      %v552 = vld [vmem:[%s459 + $0x170] sm:$0xff]
      %v553 = vld [vmem:[%s459 + $0x178] sm:$0x3]
      %v554 = vld [vmem:[%s476] sm:$0xff]
      %v555 = vld [vmem:[%s476 + $0x8] sm:$0xff]
      %v556 = vld [vmem:[%s476 + $0x10] sm:$0x3]
      %v557 = vld [vmem:[%s490] sm:$0xff]
      %v558 = vld [vmem:[%s490 + $0x8] sm:$0xff]
      %v559 = vld [vmem:[%s490 + $0x10] sm:$0x3]
      %v560 = vld [vmem:[%s3] sm:$0xff]
      %v561 = vld [vmem:[%s3 + $0x8] sm:$0x1]
      %v562 = vld [vmem:[%s4] sm:$0x1]
      %v564 = vlaneseq
      %v565 = vshrl.u32 %v564, 7
      %v566 = vsub.s32 0, %v565
      %v567 = vrot.slane %v562, %v566
      %v569 = vadd.f32 %v509, %v567
      %v570 = vadd.f32 %v510, %v567
      %v571 = vadd.f32 %v511, %v567
      %v572 = vadd.f32 %v512, %v567
      %v573 = vadd.f32 %v513, %v567
      %v574 = vadd.f32 %v514, %v567
      %v575 = vadd.f32 %v515, %v567
      %v576 = vadd.f32 %v516, %v567
      %v577 = vadd.f32 %v517, %v567
      %v578 = vadd.f32 %v518, %v567
      %v579 = vadd.f32 %v519, %v567
      %v580 = vadd.f32 %v520, %v567
      %v581 = vadd.f32 %v521, %v567
      %v582 = vadd.f32 %v522, %v567
      %v583 = vadd.f32 %v523, %v567
      %v584 = vadd.f32 %v524, %v567
      %v585 = vadd.f32 %v525, %v567
      %v586 = vadd.f32 %v526, %v567
      %v587 = vadd.f32 %v527, %v567
      %v588 = vadd.f32 %v528, %v567
      %v589 = vadd.f32 %v529, %v567
      %v590 = vadd.f32 %v530, %v567
      %v591 = vadd.f32 %v531, %v567
      %v592 = vadd.f32 %v532, %v567
      %v593 = vadd.f32 %v533, %v567
      %v594 = vadd.f32 %v534, %v567
      %v595 = vadd.f32 %v535, %v567
      %v596 = vadd.f32 %v536, %v567
      %v597 = vadd.f32 %v537, %v567
      %v598 = vadd.f32 %v538, %v567
      %v599 = vadd.f32 %v539, %v567
      %v600 = vadd.f32 %v540, %v567
      %v601 = vadd.f32 %v541, %v567
      %v602 = vadd.f32 %v542, %v567
      %v603 = vadd.f32 %v543, %v567
      %v604 = vadd.f32 %v544, %v567
      %v605 = vadd.f32 %v545, %v567
      %v606 = vadd.f32 %v546, %v567
      %v607 = vadd.f32 %v547, %v567
      %v608 = vadd.f32 %v548, %v567
      %v609 = vadd.f32 %v549, %v567
      %v610 = vadd.f32 %v550, %v567
      %v611 = vadd.f32 %v551, %v567
      %v612 = vadd.f32 %v552, %v567
      %v613 = vadd.f32 %v553, %v567
      %v614 = vadd.f32 %v554, %v567
      %v615 = vadd.f32 %v555, %v567
      %v616 = vadd.f32 %v556, %v567
      %v617 = vlaneseq
      %v618 = vshrl.u32 %v617, 7
      %v619 = vsub.s32 0, %v618
      %v620 = vrot.slane %v560, %v619
      %v621 = vmul.f32 %v506, %v620
      %v622 = vmul.f32 %v507, %v620
      %v623 = vmul.f32 %v509, %v620
      %v624 = vmul.f32 %v510, %v620
      %v625 = vmul.f32 %v512, %v620
      %v626 = vmul.f32 %v513, %v620
      %v627 = vmul.f32 %v515, %v620
      %v628 = vmul.f32 %v516, %v620
      %v629 = vmul.f32 %v518, %v620
      %v630 = vmul.f32 %v519, %v620
      %v631 = vmul.f32 %v521, %v620
      %v632 = vmul.f32 %v522, %v620
      %v633 = vmul.f32 %v524, %v620
      %v634 = vmul.f32 %v525, %v620
      %v635 = vmul.f32 %v527, %v620
      %v636 = vmul.f32 %v528, %v620
      %v637 = vmul.f32 %v530, %v620
      %v638 = vmul.f32 %v531, %v620
      %v639 = vmul.f32 %v533, %v620
      %v640 = vmul.f32 %v534, %v620
      %v641 = vmul.f32 %v536, %v620
      %v642 = vmul.f32 %v537, %v620
      %v643 = vmul.f32 %v539, %v620
      %v644 = vmul.f32 %v540, %v620
      %v645 = vmul.f32 %v542, %v620
      %v646 = vmul.f32 %v543, %v620
      %v647 = vmul.f32 %v545, %v620
      %v648 = vmul.f32 %v546, %v620
      %v649 = vmul.f32 %v548, %v620
      %v650 = vmul.f32 %v549, %v620
      %v651 = vmul.f32 %v551, %v620
      %v652 = vmul.f32 %v552, %v620
      %vm685 = vcmask 1040384
      %v686 = vrot.slane %v621, 7
      %v687 = vrot.slane %v622, 7
      %v688 = vsel %vm685, %v686, %v687
      %v689 = vrot.slane %v623, 7
      %v690 = vrot.slane %v624, 7
      %v691 = vsel %vm685, %v689, %v690
      %v692 = vrot.slane %v625, 7
      %v693 = vrot.slane %v626, 7
      %v694 = vsel %vm685, %v692, %v693
      %v695 = vrot.slane %v627, 7
      %v696 = vrot.slane %v628, 7
      %v697 = vsel %vm685, %v695, %v696
      %v698 = vrot.slane %v629, 7
      %v699 = vrot.slane %v630, 7
      %v700 = vsel %vm685, %v698, %v699
      %v701 = vrot.slane %v631, 7
      %v702 = vrot.slane %v632, 7
      %v703 = vsel %vm685, %v701, %v702
      %v704 = vrot.slane %v633, 7
      %v705 = vrot.slane %v634, 7
      %v706 = vsel %vm685, %v704, %v705
      %v707 = vrot.slane %v635, 7
      %v708 = vrot.slane %v636, 7
      %v709 = vsel %vm685, %v707, %v708
      %v710 = vrot.slane %v637, 7
      %v711 = vrot.slane %v638, 7
      %v712 = vsel %vm685, %v710, %v711
      %v713 = vrot.slane %v639, 7
      %v714 = vrot.slane %v640, 7
      %v715 = vsel %vm685, %v713, %v714
      %v716 = vrot.slane %v641, 7
      %v717 = vrot.slane %v642, 7
      %v718 = vsel %vm685, %v716, %v717
      %v719 = vrot.slane %v643, 7
      %v720 = vrot.slane %v644, 7
      %v721 = vsel %vm685, %v719, %v720
      %v722 = vrot.slane %v645, 7
      %v723 = vrot.slane %v646, 7
      %v724 = vsel %vm685, %v722, %v723
      %v725 = vrot.slane %v647, 7
      %v726 = vrot.slane %v648, 7
      %v727 = vsel %vm685, %v725, %v726
      %v728 = vrot.slane %v649, 7
      %v729 = vrot.slane %v650, 7
      %v730 = vsel %vm685, %v728, %v729
      %v731 = vrot.slane %v651, 7
      %v732 = vrot.slane %v652, 7
      %v733 = vsel %vm685, %v731, %v732
      %v782 = vadd.f32 %v569, %v686
      %v783 = vadd.f32 %v570, %v688
      %v784 = vadd.f32 %v571, %v687
      %v785 = vadd.f32 %v572, %v689
      %v786 = vadd.f32 %v573, %v691
      %v787 = vadd.f32 %v574, %v690
      %v788 = vadd.f32 %v575, %v692
      %v789 = vadd.f32 %v576, %v694
      %v790 = vadd.f32 %v577, %v693
      %v791 = vadd.f32 %v578, %v695
      %v792 = vadd.f32 %v579, %v697
      %v793 = vadd.f32 %v580, %v696
      %v794 = vadd.f32 %v581, %v698
      %v795 = vadd.f32 %v582, %v700
      %v796 = vadd.f32 %v583, %v699
      %v797 = vadd.f32 %v584, %v701
      %v798 = vadd.f32 %v585, %v703
      %v799 = vadd.f32 %v586, %v702
      %v800 = vadd.f32 %v587, %v704
      %v801 = vadd.f32 %v588, %v706
      %v802 = vadd.f32 %v589, %v705
      %v803 = vadd.f32 %v590, %v707
      %v804 = vadd.f32 %v591, %v709
      %v805 = vadd.f32 %v592, %v708
      %v806 = vadd.f32 %v593, %v710
      %v807 = vadd.f32 %v594, %v712
      %v808 = vadd.f32 %v595, %v711
      %v809 = vadd.f32 %v596, %v713
      %v810 = vadd.f32 %v597, %v715
      %v811 = vadd.f32 %v598, %v714
      %v812 = vadd.f32 %v599, %v716
      %v813 = vadd.f32 %v600, %v718
      %v814 = vadd.f32 %v601, %v717
      %v815 = vadd.f32 %v602, %v719
      %v816 = vadd.f32 %v603, %v721
      %v817 = vadd.f32 %v604, %v720
      %v818 = vadd.f32 %v605, %v722
      %v819 = vadd.f32 %v606, %v724
      %v820 = vadd.f32 %v607, %v723
      %v821 = vadd.f32 %v608, %v725
      %v822 = vadd.f32 %v609, %v727
      %v823 = vadd.f32 %v610, %v726
      %v824 = vadd.f32 %v611, %v728
      %v825 = vadd.f32 %v612, %v730
      %v826 = vadd.f32 %v613, %v729
      %v827 = vadd.f32 %v614, %v731
      %v828 = vadd.f32 %v615, %v733
      %v829 = vadd.f32 %v616, %v732
      %v830 = vlaneseq
      %v831 = vshrl.u32 %v830, 7
      %v832 = vsub.s32 1, %v831
      %v833 = vrot.slane %v560, %v832
      %v834 = vmul.f32 %v506, %v833
      %v835 = vmul.f32 %v507, %v833
      %v836 = vmul.f32 %v508, %v833
      %v837 = vmul.f32 %v509, %v833
      %v838 = vmul.f32 %v510, %v833
      %v839 = vmul.f32 %v511, %v833
      %v840 = vmul.f32 %v512, %v833
      %v841 = vmul.f32 %v513, %v833
      %v842 = vmul.f32 %v514, %v833
      %v843 = vmul.f32 %v515, %v833
      %v844 = vmul.f32 %v516, %v833
      %v845 = vmul.f32 %v517, %v833
      %v846 = vmul.f32 %v518, %v833
      %v847 = vmul.f32 %v519, %v833
      %v848 = vmul.f32 %v520, %v833
      %v849 = vmul.f32 %v521, %v833
      %v850 = vmul.f32 %v522, %v833
      %v851 = vmul.f32 %v523, %v833
      %v852 = vmul.f32 %v524, %v833
      %v853 = vmul.f32 %v525, %v833
      %v854 = vmul.f32 %v526, %v833
      %v855 = vmul.f32 %v527, %v833
      %v856 = vmul.f32 %v528, %v833
      %v857 = vmul.f32 %v529, %v833
      %v858 = vmul.f32 %v530, %v833
      %v859 = vmul.f32 %v531, %v833
      %v860 = vmul.f32 %v532, %v833
      %v861 = vmul.f32 %v533, %v833
      %v862 = vmul.f32 %v534, %v833
      %v863 = vmul.f32 %v535, %v833
      %v864 = vmul.f32 %v536, %v833
      %v865 = vmul.f32 %v537, %v833
      %v866 = vmul.f32 %v538, %v833
      %v867 = vmul.f32 %v539, %v833
      %v868 = vmul.f32 %v540, %v833
      %v869 = vmul.f32 %v541, %v833
      %v870 = vmul.f32 %v542, %v833
      %v871 = vmul.f32 %v543, %v833
      %v872 = vmul.f32 %v544, %v833
      %v873 = vmul.f32 %v545, %v833
      %v874 = vmul.f32 %v546, %v833
      %v875 = vmul.f32 %v547, %v833
      %v876 = vmul.f32 %v548, %v833
      %v877 = vmul.f32 %v549, %v833
      %v878 = vmul.f32 %v550, %v833
      %v879 = vmul.f32 %v551, %v833
      %v880 = vmul.f32 %v552, %v833
      %v881 = vmul.f32 %v553, %v833
      %v882 = vadd.f32 %v782, %v834
      %v883 = vadd.f32 %v783, %v835
      %v884 = vadd.f32 %v784, %v836
      %v885 = vadd.f32 %v785, %v837
      %v886 = vadd.f32 %v786, %v838
      %v887 = vadd.f32 %v787, %v839
      %v888 = vadd.f32 %v788, %v840
      %v889 = vadd.f32 %v789, %v841
      %v890 = vadd.f32 %v790, %v842
      %v891 = vadd.f32 %v791, %v843
      %v892 = vadd.f32 %v792, %v844
      %v893 = vadd.f32 %v793, %v845
      %v894 = vadd.f32 %v794, %v846
      %v895 = vadd.f32 %v795, %v847
      %v896 = vadd.f32 %v796, %v848
      %v897 = vadd.f32 %v797, %v849
      %v898 = vadd.f32 %v798, %v850
      %v899 = vadd.f32 %v799, %v851
      %v900 = vadd.f32 %v800, %v852
      %v901 = vadd.f32 %v801, %v853
      %v902 = vadd.f32 %v802, %v854
      %v903 = vadd.f32 %v803, %v855
      %v904 = vadd.f32 %v804, %v856
      %v905 = vadd.f32 %v805, %v857
      %v906 = vadd.f32 %v806, %v858
      %v907 = vadd.f32 %v807, %v859
      %v908 = vadd.f32 %v808, %v860
      %v909 = vadd.f32 %v809, %v861
      %v910 = vadd.f32 %v810, %v862
      %v911 = vadd.f32 %v811, %v863
      %v912 = vadd.f32 %v812, %v864
      %v913 = vadd.f32 %v813, %v865
      %v914 = vadd.f32 %v814, %v866
      %v915 = vadd.f32 %v815, %v867
      %v916 = vadd.f32 %v816, %v868
      %v917 = vadd.f32 %v817, %v869
      %v918 = vadd.f32 %v818, %v870
      %v919 = vadd.f32 %v819, %v871
      %v920 = vadd.f32 %v820, %v872
      %v921 = vadd.f32 %v821, %v873
      %v922 = vadd.f32 %v822, %v874
      %v923 = vadd.f32 %v823, %v875
      %v924 = vadd.f32 %v824, %v876
      %v925 = vadd.f32 %v825, %v877
      %v926 = vadd.f32 %v826, %v878
      %v927 = vadd.f32 %v827, %v879
      %v928 = vadd.f32 %v828, %v880
      %v929 = vadd.f32 %v829, %v881
      %v930 = vlaneseq
      %v931 = vshrl.u32 %v930, 7
      %v932 = vsub.s32 2, %v931
      %v933 = vrot.slane %v560, %v932
      %v934 = vmul.f32 %v506, %v933
      %v935 = vmul.f32 %v507, %v933
      %v936 = vmul.f32 %v508, %v933
      %v937 = vmul.f32 %v509, %v933
      %v938 = vmul.f32 %v510, %v933
      %v939 = vmul.f32 %v511, %v933
      %v940 = vmul.f32 %v512, %v933
      %v941 = vmul.f32 %v513, %v933
      %v942 = vmul.f32 %v514, %v933
      %v943 = vmul.f32 %v515, %v933
      %v944 = vmul.f32 %v516, %v933
      %v945 = vmul.f32 %v517, %v933
      %v946 = vmul.f32 %v518, %v933
      %v947 = vmul.f32 %v519, %v933
      %v948 = vmul.f32 %v520, %v933
      %v949 = vmul.f32 %v521, %v933
      %v950 = vmul.f32 %v522, %v933
      %v951 = vmul.f32 %v523, %v933
      %v952 = vmul.f32 %v524, %v933
      %v953 = vmul.f32 %v525, %v933
      %v954 = vmul.f32 %v526, %v933
      %v955 = vmul.f32 %v527, %v933
      %v956 = vmul.f32 %v528, %v933
      %v957 = vmul.f32 %v529, %v933
      %v958 = vmul.f32 %v530, %v933
      %v959 = vmul.f32 %v531, %v933
      %v960 = vmul.f32 %v532, %v933
      %v961 = vmul.f32 %v533, %v933
      %v962 = vmul.f32 %v534, %v933
      %v963 = vmul.f32 %v535, %v933
      %v964 = vmul.f32 %v536, %v933
      %v965 = vmul.f32 %v537, %v933
      %v966 = vmul.f32 %v538, %v933
      %v967 = vmul.f32 %v539, %v933
      %v968 = vmul.f32 %v540, %v933
      %v969 = vmul.f32 %v541, %v933
      %v970 = vmul.f32 %v542, %v933
      %v971 = vmul.f32 %v543, %v933
      %v972 = vmul.f32 %v544, %v933
      %v973 = vmul.f32 %v545, %v933
      %v974 = vmul.f32 %v546, %v933
      %v975 = vmul.f32 %v547, %v933
      %v976 = vmul.f32 %v548, %v933
      %v977 = vmul.f32 %v549, %v933
      %v978 = vmul.f32 %v550, %v933
      %v979 = vmul.f32 %v551, %v933
      %v980 = vmul.f32 %v552, %v933
      %v981 = vmul.f32 %v553, %v933
      %vm1030 = vcmask 1046528
      %v1031 = vrot.slane %v934, 1
      %v1032 = vrot.slane %v935, 1
      %v1033 = vsel %vm1030, %v1031, %v1032
      %v1034 = vrot.slane %v936, 1
      %v1035 = vsel %vm1030, %v1032, %v1034
      %v1036 = vrot.slane %v937, 1
      %v1037 = vrot.slane %v938, 1
      %v1038 = vsel %vm1030, %v1036, %v1037
      %v1039 = vrot.slane %v939, 1
      %v1040 = vsel %vm1030, %v1037, %v1039
      %v1041 = vrot.slane %v940, 1
      %v1042 = vrot.slane %v941, 1
      %v1043 = vsel %vm1030, %v1041, %v1042
      %v1044 = vrot.slane %v942, 1
      %v1045 = vsel %vm1030, %v1042, %v1044
      %v1046 = vrot.slane %v943, 1
      %v1047 = vrot.slane %v944, 1
      %v1048 = vsel %vm1030, %v1046, %v1047
      %v1049 = vrot.slane %v945, 1
      %v1050 = vsel %vm1030, %v1047, %v1049
      %v1051 = vrot.slane %v946, 1
      %v1052 = vrot.slane %v947, 1
      %v1053 = vsel %vm1030, %v1051, %v1052
      %v1054 = vrot.slane %v948, 1
      %v1055 = vsel %vm1030, %v1052, %v1054
      %v1056 = vrot.slane %v949, 1
      %v1057 = vrot.slane %v950, 1
      %v1058 = vsel %vm1030, %v1056, %v1057
      %v1059 = vrot.slane %v951, 1
      %v1060 = vsel %vm1030, %v1057, %v1059
      %v1061 = vrot.slane %v952, 1
      %v1062 = vrot.slane %v953, 1
      %v1063 = vsel %vm1030, %v1061, %v1062
      %v1064 = vrot.slane %v954, 1
      %v1065 = vsel %vm1030, %v1062, %v1064
      %v1066 = vrot.slane %v955, 1
      %v1067 = vrot.slane %v956, 1
      %v1068 = vsel %vm1030, %v1066, %v1067
      %v1069 = vrot.slane %v957, 1
      %v1070 = vsel %vm1030, %v1067, %v1069
      %v1071 = vrot.slane %v958, 1
      %v1072 = vrot.slane %v959, 1
      %v1073 = vsel %vm1030, %v1071, %v1072
      %v1074 = vrot.slane %v960, 1
      %v1075 = vsel %vm1030, %v1072, %v1074
      %v1076 = vrot.slane %v961, 1
      %v1077 = vrot.slane %v962, 1
      %v1078 = vsel %vm1030, %v1076, %v1077
      %v1079 = vrot.slane %v963, 1
      %v1080 = vsel %vm1030, %v1077, %v1079
      %v1081 = vrot.slane %v964, 1
      %v1082 = vrot.slane %v965, 1
      %v1083 = vsel %vm1030, %v1081, %v1082
      %v1084 = vrot.slane %v966, 1
      %v1085 = vsel %vm1030, %v1082, %v1084
      %v1086 = vrot.slane %v967, 1
      %v1087 = vrot.slane %v968, 1
      %v1088 = vsel %vm1030, %v1086, %v1087
      %v1089 = vrot.slane %v969, 1
      %v1090 = vsel %vm1030, %v1087, %v1089
      %v1091 = vrot.slane %v970, 1
      %v1092 = vrot.slane %v971, 1
      %v1093 = vsel %vm1030, %v1091, %v1092
      %v1094 = vrot.slane %v972, 1
      %v1095 = vsel %vm1030, %v1092, %v1094
      %v1096 = vrot.slane %v973, 1
      %v1097 = vrot.slane %v974, 1
      %v1098 = vsel %vm1030, %v1096, %v1097
      %v1099 = vrot.slane %v975, 1
      %v1100 = vsel %vm1030, %v1097, %v1099
      %v1101 = vrot.slane %v976, 1
      %v1102 = vrot.slane %v977, 1
      %v1103 = vsel %vm1030, %v1101, %v1102
      %v1104 = vrot.slane %v978, 1
      %v1105 = vsel %vm1030, %v1102, %v1104
      %v1106 = vrot.slane %v979, 1
      %v1107 = vrot.slane %v980, 1
      %v1108 = vsel %vm1030, %v1106, %v1107
      %v1109 = vrot.slane %v981, 1
      %v1110 = vsel %vm1030, %v1107, %v1109
      %v1159 = vadd.f32 %v882, %v1033
      %v1160 = vadd.f32 %v883, %v1035
      %v1161 = vadd.f32 %v884, %v1034
      %v1162 = vadd.f32 %v885, %v1038
      %v1163 = vadd.f32 %v886, %v1040
      %v1164 = vadd.f32 %v887, %v1039
      %v1165 = vadd.f32 %v888, %v1043
      %v1166 = vadd.f32 %v889, %v1045
      %v1167 = vadd.f32 %v890, %v1044
      %v1168 = vadd.f32 %v891, %v1048
      %v1169 = vadd.f32 %v892, %v1050
      %v1170 = vadd.f32 %v893, %v1049
      %v1171 = vadd.f32 %v894, %v1053
      %v1172 = vadd.f32 %v895, %v1055
      %v1173 = vadd.f32 %v896, %v1054
      %v1174 = vadd.f32 %v897, %v1058
      %v1175 = vadd.f32 %v898, %v1060
      %v1176 = vadd.f32 %v899, %v1059
      %v1177 = vadd.f32 %v900, %v1063
      %v1178 = vadd.f32 %v901, %v1065
      %v1179 = vadd.f32 %v902, %v1064
      %v1180 = vadd.f32 %v903, %v1068
      %v1181 = vadd.f32 %v904, %v1070
      %v1182 = vadd.f32 %v905, %v1069
      %v1183 = vadd.f32 %v906, %v1073
      %v1184 = vadd.f32 %v907, %v1075
      %v1185 = vadd.f32 %v908, %v1074
      %v1186 = vadd.f32 %v909, %v1078
      %v1187 = vadd.f32 %v910, %v1080
      %v1188 = vadd.f32 %v911, %v1079
      %v1189 = vadd.f32 %v912, %v1083
      %v1190 = vadd.f32 %v913, %v1085
      %v1191 = vadd.f32 %v914, %v1084
      %v1192 = vadd.f32 %v915, %v1088
      %v1193 = vadd.f32 %v916, %v1090
      %v1194 = vadd.f32 %v917, %v1089
      %v1195 = vadd.f32 %v918, %v1093
      %v1196 = vadd.f32 %v919, %v1095
      %v1197 = vadd.f32 %v920, %v1094
      %v1198 = vadd.f32 %v921, %v1098
      %v1199 = vadd.f32 %v922, %v1100
      %v1200 = vadd.f32 %v923, %v1099
      %v1201 = vadd.f32 %v924, %v1103
      %v1202 = vadd.f32 %v925, %v1105
      %v1203 = vadd.f32 %v926, %v1104
      %v1204 = vadd.f32 %v927, %v1108
      %v1205 = vadd.f32 %v928, %v1110
      %v1206 = vadd.f32 %v929, %v1109
      %v1207 = vlaneseq
      %v1208 = vshrl.u32 %v1207, 7
      %v1209 = vsub.s32 3, %v1208
      %v1210 = vrot.slane %v560, %v1209
      %v1211 = vmul.f32 %v509, %v1210
      %v1212 = vmul.f32 %v510, %v1210
      %v1213 = vmul.f32 %v512, %v1210
      %v1214 = vmul.f32 %v513, %v1210
      %v1215 = vmul.f32 %v515, %v1210
      %v1216 = vmul.f32 %v516, %v1210
      %v1217 = vmul.f32 %v518, %v1210
      %v1218 = vmul.f32 %v519, %v1210
      %v1219 = vmul.f32 %v521, %v1210
      %v1220 = vmul.f32 %v522, %v1210
      %v1221 = vmul.f32 %v524, %v1210
      %v1222 = vmul.f32 %v525, %v1210
      %v1223 = vmul.f32 %v527, %v1210
      %v1224 = vmul.f32 %v528, %v1210
      %v1225 = vmul.f32 %v530, %v1210
      %v1226 = vmul.f32 %v531, %v1210
      %v1227 = vmul.f32 %v533, %v1210
      %v1228 = vmul.f32 %v534, %v1210
      %v1229 = vmul.f32 %v536, %v1210
      %v1230 = vmul.f32 %v537, %v1210
      %v1231 = vmul.f32 %v539, %v1210
      %v1232 = vmul.f32 %v540, %v1210
      %v1233 = vmul.f32 %v542, %v1210
      %v1234 = vmul.f32 %v543, %v1210
      %v1235 = vmul.f32 %v545, %v1210
      %v1236 = vmul.f32 %v546, %v1210
      %v1237 = vmul.f32 %v548, %v1210
      %v1238 = vmul.f32 %v549, %v1210
      %v1239 = vmul.f32 %v551, %v1210
      %v1240 = vmul.f32 %v552, %v1210
      %v1241 = vmul.f32 %v554, %v1210
      %v1242 = vmul.f32 %v555, %v1210
      %v1275 = vrot.slane %v1211, 7
      %v1276 = vrot.slane %v1212, 7
      %v1277 = vsel %vm685, %v1275, %v1276
      %v1278 = vrot.slane %v1213, 7
      %v1279 = vrot.slane %v1214, 7
      %v1280 = vsel %vm685, %v1278, %v1279
      %v1281 = vrot.slane %v1215, 7
      %v1282 = vrot.slane %v1216, 7
      %v1283 = vsel %vm685, %v1281, %v1282
      %v1284 = vrot.slane %v1217, 7
      %v1285 = vrot.slane %v1218, 7
      %v1286 = vsel %vm685, %v1284, %v1285
      %v1287 = vrot.slane %v1219, 7
      %v1288 = vrot.slane %v1220, 7
      %v1289 = vsel %vm685, %v1287, %v1288
      %v1290 = vrot.slane %v1221, 7
      %v1291 = vrot.slane %v1222, 7
      %v1292 = vsel %vm685, %v1290, %v1291
      %v1293 = vrot.slane %v1223, 7
      %v1294 = vrot.slane %v1224, 7
      %v1295 = vsel %vm685, %v1293, %v1294
      %v1296 = vrot.slane %v1225, 7
      %v1297 = vrot.slane %v1226, 7
      %v1298 = vsel %vm685, %v1296, %v1297
      %v1299 = vrot.slane %v1227, 7
      %v1300 = vrot.slane %v1228, 7
      %v1301 = vsel %vm685, %v1299, %v1300
      %v1302 = vrot.slane %v1229, 7
      %v1303 = vrot.slane %v1230, 7
      %v1304 = vsel %vm685, %v1302, %v1303
      %v1305 = vrot.slane %v1231, 7
      %v1306 = vrot.slane %v1232, 7
      %v1307 = vsel %vm685, %v1305, %v1306
      %v1308 = vrot.slane %v1233, 7
      %v1309 = vrot.slane %v1234, 7
      %v1310 = vsel %vm685, %v1308, %v1309
      %v1311 = vrot.slane %v1235, 7
      %v1312 = vrot.slane %v1236, 7
      %v1313 = vsel %vm685, %v1311, %v1312
      %v1314 = vrot.slane %v1237, 7
      %v1315 = vrot.slane %v1238, 7
      %v1316 = vsel %vm685, %v1314, %v1315
      %v1317 = vrot.slane %v1239, 7
      %v1318 = vrot.slane %v1240, 7
      %v1319 = vsel %vm685, %v1317, %v1318
      %v1320 = vrot.slane %v1241, 7
      %v1321 = vrot.slane %v1242, 7
      %v1322 = vsel %vm685, %v1320, %v1321
      %v1371 = vadd.f32 %v1159, %v1275
      %v1372 = vadd.f32 %v1160, %v1277
      %v1373 = vadd.f32 %v1161, %v1276
      %v1374 = vadd.f32 %v1162, %v1278
      %v1375 = vadd.f32 %v1163, %v1280
      %v1376 = vadd.f32 %v1164, %v1279
      %v1377 = vadd.f32 %v1165, %v1281
      %v1378 = vadd.f32 %v1166, %v1283
      %v1379 = vadd.f32 %v1167, %v1282
      %v1380 = vadd.f32 %v1168, %v1284
      %v1381 = vadd.f32 %v1169, %v1286
      %v1382 = vadd.f32 %v1170, %v1285
      %v1383 = vadd.f32 %v1171, %v1287
      %v1384 = vadd.f32 %v1172, %v1289
      %v1385 = vadd.f32 %v1173, %v1288
      %v1386 = vadd.f32 %v1174, %v1290
      %v1387 = vadd.f32 %v1175, %v1292
      %v1388 = vadd.f32 %v1176, %v1291
      %v1389 = vadd.f32 %v1177, %v1293
      %v1390 = vadd.f32 %v1178, %v1295
      %v1391 = vadd.f32 %v1179, %v1294
      %v1392 = vadd.f32 %v1180, %v1296
      %v1393 = vadd.f32 %v1181, %v1298
      %v1394 = vadd.f32 %v1182, %v1297
      %v1395 = vadd.f32 %v1183, %v1299
      %v1396 = vadd.f32 %v1184, %v1301
      %v1397 = vadd.f32 %v1185, %v1300
      %v1398 = vadd.f32 %v1186, %v1302
      %v1399 = vadd.f32 %v1187, %v1304
      %v1400 = vadd.f32 %v1188, %v1303
      %v1401 = vadd.f32 %v1189, %v1305
      %v1402 = vadd.f32 %v1190, %v1307
      %v1403 = vadd.f32 %v1191, %v1306
      %v1404 = vadd.f32 %v1192, %v1308
      %v1405 = vadd.f32 %v1193, %v1310
      %v1406 = vadd.f32 %v1194, %v1309
      %v1407 = vadd.f32 %v1195, %v1311
      %v1408 = vadd.f32 %v1196, %v1313
      %v1409 = vadd.f32 %v1197, %v1312
      %v1410 = vadd.f32 %v1198, %v1314
      %v1411 = vadd.f32 %v1199, %v1316
      %v1412 = vadd.f32 %v1200, %v1315
      %v1413 = vadd.f32 %v1201, %v1317
      %v1414 = vadd.f32 %v1202, %v1319
      %v1415 = vadd.f32 %v1203, %v1318
      %v1416 = vadd.f32 %v1204, %v1320
      %v1417 = vadd.f32 %v1205, %v1322
      %v1418 = vadd.f32 %v1206, %v1321
      %v1419 = vlaneseq
      %v1420 = vshrl.u32 %v1419, 7
      %v1421 = vsub.s32 4, %v1420
      %v1422 = vrot.slane %v560, %v1421
      %v1423 = vmul.f32 %v509, %v1422
      %v1424 = vmul.f32 %v510, %v1422
      %v1425 = vmul.f32 %v511, %v1422
      %v1426 = vmul.f32 %v512, %v1422
      %v1427 = vmul.f32 %v513, %v1422
      %v1428 = vmul.f32 %v514, %v1422
      %v1429 = vmul.f32 %v515, %v1422
      %v1430 = vmul.f32 %v516, %v1422
      %v1431 = vmul.f32 %v517, %v1422
      %v1432 = vmul.f32 %v518, %v1422
      %v1433 = vmul.f32 %v519, %v1422
      %v1434 = vmul.f32 %v520, %v1422
      %v1435 = vmul.f32 %v521, %v1422
      %v1436 = vmul.f32 %v522, %v1422
      %v1437 = vmul.f32 %v523, %v1422
      %v1438 = vmul.f32 %v524, %v1422
      %v1439 = vmul.f32 %v525, %v1422
      %v1440 = vmul.f32 %v526, %v1422
      %v1441 = vmul.f32 %v527, %v1422
      %v1442 = vmul.f32 %v528, %v1422
      %v1443 = vmul.f32 %v529, %v1422
      %v1444 = vmul.f32 %v530, %v1422
      %v1445 = vmul.f32 %v531, %v1422
      %v1446 = vmul.f32 %v532, %v1422
      %v1447 = vmul.f32 %v533, %v1422
      %v1448 = vmul.f32 %v534, %v1422
      %v1449 = vmul.f32 %v535, %v1422
      %v1450 = vmul.f32 %v536, %v1422
      %v1451 = vmul.f32 %v537, %v1422
      %v1452 = vmul.f32 %v538, %v1422
      %v1453 = vmul.f32 %v539, %v1422
      %v1454 = vmul.f32 %v540, %v1422
      %v1455 = vmul.f32 %v541, %v1422
      %v1456 = vmul.f32 %v542, %v1422
      %v1457 = vmul.f32 %v543, %v1422
      %v1458 = vmul.f32 %v544, %v1422
      %v1459 = vmul.f32 %v545, %v1422
      %v1460 = vmul.f32 %v546, %v1422
      %v1461 = vmul.f32 %v547, %v1422
      %v1462 = vmul.f32 %v548, %v1422
      %v1463 = vmul.f32 %v549, %v1422
      %v1464 = vmul.f32 %v550, %v1422
      %v1465 = vmul.f32 %v551, %v1422
      %v1466 = vmul.f32 %v552, %v1422
      %v1467 = vmul.f32 %v553, %v1422
      %v1468 = vmul.f32 %v554, %v1422
      %v1469 = vmul.f32 %v555, %v1422
      %v1470 = vmul.f32 %v556, %v1422
      %v1471 = vadd.f32 %v1371, %v1423
      %v1472 = vadd.f32 %v1372, %v1424
      %v1473 = vadd.f32 %v1373, %v1425
      %v1474 = vadd.f32 %v1374, %v1426
      %v1475 = vadd.f32 %v1375, %v1427
      %v1476 = vadd.f32 %v1376, %v1428
      %v1477 = vadd.f32 %v1377, %v1429
      %v1478 = vadd.f32 %v1378, %v1430
      %v1479 = vadd.f32 %v1379, %v1431
      %v1480 = vadd.f32 %v1380, %v1432
      %v1481 = vadd.f32 %v1381, %v1433
      %v1482 = vadd.f32 %v1382, %v1434
      %v1483 = vadd.f32 %v1383, %v1435
      %v1484 = vadd.f32 %v1384, %v1436
      %v1485 = vadd.f32 %v1385, %v1437
      %v1486 = vadd.f32 %v1386, %v1438
      %v1487 = vadd.f32 %v1387, %v1439
      %v1488 = vadd.f32 %v1388, %v1440
      %v1489 = vadd.f32 %v1389, %v1441
      %v1490 = vadd.f32 %v1390, %v1442
      %v1491 = vadd.f32 %v1391, %v1443
      %v1492 = vadd.f32 %v1392, %v1444
      %v1493 = vadd.f32 %v1393, %v1445
      %v1494 = vadd.f32 %v1394, %v1446
      %v1495 = vadd.f32 %v1395, %v1447
      %v1496 = vadd.f32 %v1396, %v1448
      %v1497 = vadd.f32 %v1397, %v1449
      %v1498 = vadd.f32 %v1398, %v1450
      %v1499 = vadd.f32 %v1399, %v1451
      %v1500 = vadd.f32 %v1400, %v1452
      %v1501 = vadd.f32 %v1401, %v1453
      %v1502 = vadd.f32 %v1402, %v1454
      %v1503 = vadd.f32 %v1403, %v1455
      %v1504 = vadd.f32 %v1404, %v1456
      %v1505 = vadd.f32 %v1405, %v1457
      %v1506 = vadd.f32 %v1406, %v1458
      %v1507 = vadd.f32 %v1407, %v1459
      %v1508 = vadd.f32 %v1408, %v1460
      %v1509 = vadd.f32 %v1409, %v1461
      %v1510 = vadd.f32 %v1410, %v1462
      %v1511 = vadd.f32 %v1411, %v1463
      %v1512 = vadd.f32 %v1412, %v1464
      %v1513 = vadd.f32 %v1413, %v1465
      %v1514 = vadd.f32 %v1414, %v1466
      %v1515 = vadd.f32 %v1415, %v1467
      %v1516 = vadd.f32 %v1416, %v1468
      %v1517 = vadd.f32 %v1417, %v1469
      %v1518 = vadd.f32 %v1418, %v1470
      %v1519 = vlaneseq
      %v1520 = vshrl.u32 %v1519, 7
      %v1521 = vsub.s32 5, %v1520
      %v1522 = vrot.slane %v560, %v1521
      %v1523 = vmul.f32 %v509, %v1522
      %v1524 = vmul.f32 %v510, %v1522
      %v1525 = vmul.f32 %v511, %v1522
      %v1526 = vmul.f32 %v512, %v1522
      %v1527 = vmul.f32 %v513, %v1522
      %v1528 = vmul.f32 %v514, %v1522
      %v1529 = vmul.f32 %v515, %v1522
      %v1530 = vmul.f32 %v516, %v1522
      %v1531 = vmul.f32 %v517, %v1522
      %v1532 = vmul.f32 %v518, %v1522
      %v1533 = vmul.f32 %v519, %v1522
      %v1534 = vmul.f32 %v520, %v1522
      %v1535 = vmul.f32 %v521, %v1522
      %v1536 = vmul.f32 %v522, %v1522
      %v1537 = vmul.f32 %v523, %v1522
      %v1538 = vmul.f32 %v524, %v1522
      %v1539 = vmul.f32 %v525, %v1522
      %v1540 = vmul.f32 %v526, %v1522
      %v1541 = vmul.f32 %v527, %v1522
      %v1542 = vmul.f32 %v528, %v1522
      %v1543 = vmul.f32 %v529, %v1522
      %v1544 = vmul.f32 %v530, %v1522
      %v1545 = vmul.f32 %v531, %v1522
      %v1546 = vmul.f32 %v532, %v1522
      %v1547 = vmul.f32 %v533, %v1522
      %v1548 = vmul.f32 %v534, %v1522
      %v1549 = vmul.f32 %v535, %v1522
      %v1550 = vmul.f32 %v536, %v1522
      %v1551 = vmul.f32 %v537, %v1522
      %v1552 = vmul.f32 %v538, %v1522
      %v1553 = vmul.f32 %v539, %v1522
      %v1554 = vmul.f32 %v540, %v1522
      %v1555 = vmul.f32 %v541, %v1522
      %v1556 = vmul.f32 %v542, %v1522
      %v1557 = vmul.f32 %v543, %v1522
      %v1558 = vmul.f32 %v544, %v1522
      %v1559 = vmul.f32 %v545, %v1522
      %v1560 = vmul.f32 %v546, %v1522
      %v1561 = vmul.f32 %v547, %v1522
      %v1562 = vmul.f32 %v548, %v1522
      %v1563 = vmul.f32 %v549, %v1522
      %v1564 = vmul.f32 %v550, %v1522
      %v1565 = vmul.f32 %v551, %v1522
      %v1566 = vmul.f32 %v552, %v1522
      %v1567 = vmul.f32 %v553, %v1522
      %v1568 = vmul.f32 %v554, %v1522
      %v1569 = vmul.f32 %v555, %v1522
      %v1570 = vmul.f32 %v556, %v1522
      %v1619 = vrot.slane %v1523, 1
      %v1620 = vrot.slane %v1524, 1
      %v1621 = vsel %vm1030, %v1619, %v1620
      %v1622 = vrot.slane %v1525, 1
      %v1623 = vsel %vm1030, %v1620, %v1622
      %v1624 = vrot.slane %v1526, 1
      %v1625 = vrot.slane %v1527, 1
      %v1626 = vsel %vm1030, %v1624, %v1625
      %v1627 = vrot.slane %v1528, 1
      %v1628 = vsel %vm1030, %v1625, %v1627
      %v1629 = vrot.slane %v1529, 1
      %v1630 = vrot.slane %v1530, 1
      %v1631 = vsel %vm1030, %v1629, %v1630
      %v1632 = vrot.slane %v1531, 1
      %v1633 = vsel %vm1030, %v1630, %v1632
      %v1634 = vrot.slane %v1532, 1
      %v1635 = vrot.slane %v1533, 1
      %v1636 = vsel %vm1030, %v1634, %v1635
      %v1637 = vrot.slane %v1534, 1
      %v1638 = vsel %vm1030, %v1635, %v1637
      %v1639 = vrot.slane %v1535, 1
      %v1640 = vrot.slane %v1536, 1
      %v1641 = vsel %vm1030, %v1639, %v1640
      %v1642 = vrot.slane %v1537, 1
      %v1643 = vsel %vm1030, %v1640, %v1642
      %v1644 = vrot.slane %v1538, 1
      %v1645 = vrot.slane %v1539, 1
      %v1646 = vsel %vm1030, %v1644, %v1645
      %v1647 = vrot.slane %v1540, 1
      %v1648 = vsel %vm1030, %v1645, %v1647
      %v1649 = vrot.slane %v1541, 1
      %v1650 = vrot.slane %v1542, 1
      %v1651 = vsel %vm1030, %v1649, %v1650
      %v1652 = vrot.slane %v1543, 1
      %v1653 = vsel %vm1030, %v1650, %v1652
      %v1654 = vrot.slane %v1544, 1
      %v1655 = vrot.slane %v1545, 1
      %v1656 = vsel %vm1030, %v1654, %v1655
      %v1657 = vrot.slane %v1546, 1
      %v1658 = vsel %vm1030, %v1655, %v1657
      %v1659 = vrot.slane %v1547, 1
      %v1660 = vrot.slane %v1548, 1
      %v1661 = vsel %vm1030, %v1659, %v1660
      %v1662 = vrot.slane %v1549, 1
      %v1663 = vsel %vm1030, %v1660, %v1662
      %v1664 = vrot.slane %v1550, 1
      %v1665 = vrot.slane %v1551, 1
      %v1666 = vsel %vm1030, %v1664, %v1665
      %v1667 = vrot.slane %v1552, 1
      %v1668 = vsel %vm1030, %v1665, %v1667
      %v1669 = vrot.slane %v1553, 1
      %v1670 = vrot.slane %v1554, 1
      %v1671 = vsel %vm1030, %v1669, %v1670
      %v1672 = vrot.slane %v1555, 1
      %v1673 = vsel %vm1030, %v1670, %v1672
      %v1674 = vrot.slane %v1556, 1
      %v1675 = vrot.slane %v1557, 1
      %v1676 = vsel %vm1030, %v1674, %v1675
      %v1677 = vrot.slane %v1558, 1
      %v1678 = vsel %vm1030, %v1675, %v1677
      %v1679 = vrot.slane %v1559, 1
      %v1680 = vrot.slane %v1560, 1
      %v1681 = vsel %vm1030, %v1679, %v1680
      %v1682 = vrot.slane %v1561, 1
      %v1683 = vsel %vm1030, %v1680, %v1682
      %v1684 = vrot.slane %v1562, 1
      %v1685 = vrot.slane %v1563, 1
      %v1686 = vsel %vm1030, %v1684, %v1685
      %v1687 = vrot.slane %v1564, 1
      %v1688 = vsel %vm1030, %v1685, %v1687
      %v1689 = vrot.slane %v1565, 1
      %v1690 = vrot.slane %v1566, 1
      %v1691 = vsel %vm1030, %v1689, %v1690
      %v1692 = vrot.slane %v1567, 1
      %v1693 = vsel %vm1030, %v1690, %v1692
      %v1694 = vrot.slane %v1568, 1
      %v1695 = vrot.slane %v1569, 1
      %v1696 = vsel %vm1030, %v1694, %v1695
      %v1697 = vrot.slane %v1570, 1
      %v1698 = vsel %vm1030, %v1695, %v1697
      %v1747 = vadd.f32 %v1471, %v1621
      %v1748 = vadd.f32 %v1472, %v1623
      %v1749 = vadd.f32 %v1473, %v1622
      %v1750 = vadd.f32 %v1474, %v1626
      %v1751 = vadd.f32 %v1475, %v1628
      %v1752 = vadd.f32 %v1476, %v1627
      %v1753 = vadd.f32 %v1477, %v1631
      %v1754 = vadd.f32 %v1478, %v1633
      %v1755 = vadd.f32 %v1479, %v1632
      %v1756 = vadd.f32 %v1480, %v1636
      %v1757 = vadd.f32 %v1481, %v1638
      %v1758 = vadd.f32 %v1482, %v1637
      %v1759 = vadd.f32 %v1483, %v1641
      %v1760 = vadd.f32 %v1484, %v1643
      %v1761 = vadd.f32 %v1485, %v1642
      %v1762 = vadd.f32 %v1486, %v1646
      %v1763 = vadd.f32 %v1487, %v1648
      %v1764 = vadd.f32 %v1488, %v1647
      %v1765 = vadd.f32 %v1489, %v1651
      %v1766 = vadd.f32 %v1490, %v1653
      %v1767 = vadd.f32 %v1491, %v1652
      %v1768 = vadd.f32 %v1492, %v1656
      %v1769 = vadd.f32 %v1493, %v1658
      %v1770 = vadd.f32 %v1494, %v1657
      %v1771 = vadd.f32 %v1495, %v1661
      %v1772 = vadd.f32 %v1496, %v1663
      %v1773 = vadd.f32 %v1497, %v1662
      %v1774 = vadd.f32 %v1498, %v1666
      %v1775 = vadd.f32 %v1499, %v1668
      %v1776 = vadd.f32 %v1500, %v1667
      %v1777 = vadd.f32 %v1501, %v1671
      %v1778 = vadd.f32 %v1502, %v1673
      %v1779 = vadd.f32 %v1503, %v1672
      %v1780 = vadd.f32 %v1504, %v1676
      %v1781 = vadd.f32 %v1505, %v1678
      %v1782 = vadd.f32 %v1506, %v1677
      %v1783 = vadd.f32 %v1507, %v1681
      %v1784 = vadd.f32 %v1508, %v1683
      %v1785 = vadd.f32 %v1509, %v1682
      %v1786 = vadd.f32 %v1510, %v1686
      %v1787 = vadd.f32 %v1511, %v1688
      %v1788 = vadd.f32 %v1512, %v1687
      %v1789 = vadd.f32 %v1513, %v1691
      %v1790 = vadd.f32 %v1514, %v1693
      %v1791 = vadd.f32 %v1515, %v1692
      %v1792 = vadd.f32 %v1516, %v1696
      %v1793 = vadd.f32 %v1517, %v1698
      %v1794 = vadd.f32 %v1518, %v1697
      %v1795 = vlaneseq
      %v1796 = vshrl.u32 %v1795, 7
      %v1797 = vsub.s32 6, %v1796
      %v1798 = vrot.slane %v560, %v1797
      %v1799 = vmul.f32 %v512, %v1798
      %v1800 = vmul.f32 %v513, %v1798
      %v1801 = vmul.f32 %v515, %v1798
      %v1802 = vmul.f32 %v516, %v1798
      %v1803 = vmul.f32 %v518, %v1798
      %v1804 = vmul.f32 %v519, %v1798
      %v1805 = vmul.f32 %v521, %v1798
      %v1806 = vmul.f32 %v522, %v1798
      %v1807 = vmul.f32 %v524, %v1798
      %v1808 = vmul.f32 %v525, %v1798
      %v1809 = vmul.f32 %v527, %v1798
      %v1810 = vmul.f32 %v528, %v1798
      %v1811 = vmul.f32 %v530, %v1798
      %v1812 = vmul.f32 %v531, %v1798
      %v1813 = vmul.f32 %v533, %v1798
      %v1814 = vmul.f32 %v534, %v1798
      %v1815 = vmul.f32 %v536, %v1798
      %v1816 = vmul.f32 %v537, %v1798
      %v1817 = vmul.f32 %v539, %v1798
      %v1818 = vmul.f32 %v540, %v1798
      %v1819 = vmul.f32 %v542, %v1798
      %v1820 = vmul.f32 %v543, %v1798
      %v1821 = vmul.f32 %v545, %v1798
      %v1822 = vmul.f32 %v546, %v1798
      %v1823 = vmul.f32 %v548, %v1798
      %v1824 = vmul.f32 %v549, %v1798
      %v1825 = vmul.f32 %v551, %v1798
      %v1826 = vmul.f32 %v552, %v1798
      %v1827 = vmul.f32 %v554, %v1798
      %v1828 = vmul.f32 %v555, %v1798
      %v1829 = vmul.f32 %v557, %v1798
      %v1830 = vmul.f32 %v558, %v1798
      %v1863 = vrot.slane %v1799, 7
      %v1864 = vrot.slane %v1800, 7
      %v1865 = vsel %vm685, %v1863, %v1864
      %v1866 = vrot.slane %v1801, 7
      %v1867 = vrot.slane %v1802, 7
      %v1868 = vsel %vm685, %v1866, %v1867
      %v1869 = vrot.slane %v1803, 7
      %v1870 = vrot.slane %v1804, 7
      %v1871 = vsel %vm685, %v1869, %v1870
      %v1872 = vrot.slane %v1805, 7
      %v1873 = vrot.slane %v1806, 7
      %v1874 = vsel %vm685, %v1872, %v1873
      %v1875 = vrot.slane %v1807, 7
      %v1876 = vrot.slane %v1808, 7
      %v1877 = vsel %vm685, %v1875, %v1876
      %v1878 = vrot.slane %v1809, 7
      %v1879 = vrot.slane %v1810, 7
      %v1880 = vsel %vm685, %v1878, %v1879
      %v1881 = vrot.slane %v1811, 7
      %v1882 = vrot.slane %v1812, 7
      %v1883 = vsel %vm685, %v1881, %v1882
      %v1884 = vrot.slane %v1813, 7
      %v1885 = vrot.slane %v1814, 7
      %v1886 = vsel %vm685, %v1884, %v1885
      %v1887 = vrot.slane %v1815, 7
      %v1888 = vrot.slane %v1816, 7
      %v1889 = vsel %vm685, %v1887, %v1888
      %v1890 = vrot.slane %v1817, 7
      %v1891 = vrot.slane %v1818, 7
      %v1892 = vsel %vm685, %v1890, %v1891
      %v1893 = vrot.slane %v1819, 7
      %v1894 = vrot.slane %v1820, 7
      %v1895 = vsel %vm685, %v1893, %v1894
      %v1896 = vrot.slane %v1821, 7
      %v1897 = vrot.slane %v1822, 7
      %v1898 = vsel %vm685, %v1896, %v1897
      %v1899 = vrot.slane %v1823, 7
      %v1900 = vrot.slane %v1824, 7
      %v1901 = vsel %vm685, %v1899, %v1900
      %v1902 = vrot.slane %v1825, 7
      %v1903 = vrot.slane %v1826, 7
      %v1904 = vsel %vm685, %v1902, %v1903
      %v1905 = vrot.slane %v1827, 7
      %v1906 = vrot.slane %v1828, 7
      %v1907 = vsel %vm685, %v1905, %v1906
      %v1908 = vrot.slane %v1829, 7
      %v1909 = vrot.slane %v1830, 7
      %v1910 = vsel %vm685, %v1908, %v1909
      %v1959 = vadd.f32 %v1747, %v1863
      %v1960 = vadd.f32 %v1748, %v1865
      %v1961 = vadd.f32 %v1749, %v1864
      %v1962 = vadd.f32 %v1750, %v1866
      %v1963 = vadd.f32 %v1751, %v1868
      %v1964 = vadd.f32 %v1752, %v1867
      %v1965 = vadd.f32 %v1753, %v1869
      %v1966 = vadd.f32 %v1754, %v1871
      %v1967 = vadd.f32 %v1755, %v1870
      %v1968 = vadd.f32 %v1756, %v1872
      %v1969 = vadd.f32 %v1757, %v1874
      %v1970 = vadd.f32 %v1758, %v1873
      %v1971 = vadd.f32 %v1759, %v1875
      %v1972 = vadd.f32 %v1760, %v1877
      %v1973 = vadd.f32 %v1761, %v1876
      %v1974 = vadd.f32 %v1762, %v1878
      %v1975 = vadd.f32 %v1763, %v1880
      %v1976 = vadd.f32 %v1764, %v1879
      %v1977 = vadd.f32 %v1765, %v1881
      %v1978 = vadd.f32 %v1766, %v1883
      %v1979 = vadd.f32 %v1767, %v1882
      %v1980 = vadd.f32 %v1768, %v1884
      %v1981 = vadd.f32 %v1769, %v1886
      %v1982 = vadd.f32 %v1770, %v1885
      %v1983 = vadd.f32 %v1771, %v1887
      %v1984 = vadd.f32 %v1772, %v1889
      %v1985 = vadd.f32 %v1773, %v1888
      %v1986 = vadd.f32 %v1774, %v1890
      %v1987 = vadd.f32 %v1775, %v1892
      %v1988 = vadd.f32 %v1776, %v1891
      %v1989 = vadd.f32 %v1777, %v1893
      %v1990 = vadd.f32 %v1778, %v1895
      %v1991 = vadd.f32 %v1779, %v1894
      %v1992 = vadd.f32 %v1780, %v1896
      %v1993 = vadd.f32 %v1781, %v1898
      %v1994 = vadd.f32 %v1782, %v1897
      %v1995 = vadd.f32 %v1783, %v1899
      %v1996 = vadd.f32 %v1784, %v1901
      %v1997 = vadd.f32 %v1785, %v1900
      %v1998 = vadd.f32 %v1786, %v1902
      %v1999 = vadd.f32 %v1787, %v1904
      %v2000 = vadd.f32 %v1788, %v1903
      %v2001 = vadd.f32 %v1789, %v1905
      %v2002 = vadd.f32 %v1790, %v1907
      %v2003 = vadd.f32 %v1791, %v1906
      %v2004 = vadd.f32 %v1792, %v1908
      %v2005 = vadd.f32 %v1793, %v1910
      %v2006 = vadd.f32 %v1794, %v1909
      %v2007 = vlaneseq
      %v2008 = vshrl.u32 %v2007, 7
      %v2009 = vsub.s32 7, %v2008
      %v2010 = vrot.slane %v560, %v2009
      %v2011 = vmul.f32 %v512, %v2010
      %v2012 = vmul.f32 %v513, %v2010
      %v2013 = vmul.f32 %v514, %v2010
      %v2014 = vmul.f32 %v515, %v2010
      %v2015 = vmul.f32 %v516, %v2010
      %v2016 = vmul.f32 %v517, %v2010
      %v2017 = vmul.f32 %v518, %v2010
      %v2018 = vmul.f32 %v519, %v2010
      %v2019 = vmul.f32 %v520, %v2010
      %v2020 = vmul.f32 %v521, %v2010
      %v2021 = vmul.f32 %v522, %v2010
      %v2022 = vmul.f32 %v523, %v2010
      %v2023 = vmul.f32 %v524, %v2010
      %v2024 = vmul.f32 %v525, %v2010
      %v2025 = vmul.f32 %v526, %v2010
      %v2026 = vmul.f32 %v527, %v2010
      %v2027 = vmul.f32 %v528, %v2010
      %v2028 = vmul.f32 %v529, %v2010
      %v2029 = vmul.f32 %v530, %v2010
      %v2030 = vmul.f32 %v531, %v2010
      %v2031 = vmul.f32 %v532, %v2010
      %v2032 = vmul.f32 %v533, %v2010
      %v2033 = vmul.f32 %v534, %v2010
      %v2034 = vmul.f32 %v535, %v2010
      %v2035 = vmul.f32 %v536, %v2010
      %v2036 = vmul.f32 %v537, %v2010
      %v2037 = vmul.f32 %v538, %v2010
      %v2038 = vmul.f32 %v539, %v2010
      %v2039 = vmul.f32 %v540, %v2010
      %v2040 = vmul.f32 %v541, %v2010
      %v2041 = vmul.f32 %v542, %v2010
      %v2042 = vmul.f32 %v543, %v2010
      %v2043 = vmul.f32 %v544, %v2010
      %v2044 = vmul.f32 %v545, %v2010
      %v2045 = vmul.f32 %v546, %v2010
      %v2046 = vmul.f32 %v547, %v2010
      %v2047 = vmul.f32 %v548, %v2010
      %v2048 = vmul.f32 %v549, %v2010
      %v2049 = vmul.f32 %v550, %v2010
      %v2050 = vmul.f32 %v551, %v2010
      %v2051 = vmul.f32 %v552, %v2010
      %v2052 = vmul.f32 %v553, %v2010
      %v2053 = vmul.f32 %v554, %v2010
      %v2054 = vmul.f32 %v555, %v2010
      %v2055 = vmul.f32 %v556, %v2010
      %v2056 = vmul.f32 %v557, %v2010
      %v2057 = vmul.f32 %v558, %v2010
      %v2058 = vmul.f32 %v559, %v2010
      %v2059 = vadd.f32 %v1959, %v2011
      %v2060 = vadd.f32 %v1960, %v2012
      %v2061 = vadd.f32 %v1961, %v2013
      %v2062 = vadd.f32 %v1962, %v2014
      %v2063 = vadd.f32 %v1963, %v2015
      %v2064 = vadd.f32 %v1964, %v2016
      %v2065 = vadd.f32 %v1965, %v2017
      %v2066 = vadd.f32 %v1966, %v2018
      %v2067 = vadd.f32 %v1967, %v2019
      %v2068 = vadd.f32 %v1968, %v2020
      %v2069 = vadd.f32 %v1969, %v2021
      %v2070 = vadd.f32 %v1970, %v2022
      %v2071 = vadd.f32 %v1971, %v2023
      %v2072 = vadd.f32 %v1972, %v2024
      %v2073 = vadd.f32 %v1973, %v2025
      %v2074 = vadd.f32 %v1974, %v2026
      %v2075 = vadd.f32 %v1975, %v2027
      %v2076 = vadd.f32 %v1976, %v2028
      %v2077 = vadd.f32 %v1977, %v2029
      %v2078 = vadd.f32 %v1978, %v2030
      %v2079 = vadd.f32 %v1979, %v2031
      %v2080 = vadd.f32 %v1980, %v2032
      %v2081 = vadd.f32 %v1981, %v2033
      %v2082 = vadd.f32 %v1982, %v2034
      %v2083 = vadd.f32 %v1983, %v2035
      %v2084 = vadd.f32 %v1984, %v2036
      %v2085 = vadd.f32 %v1985, %v2037
      %v2086 = vadd.f32 %v1986, %v2038
      %v2087 = vadd.f32 %v1987, %v2039
      %v2088 = vadd.f32 %v1988, %v2040
      %v2089 = vadd.f32 %v1989, %v2041
      %v2090 = vadd.f32 %v1990, %v2042
      %v2091 = vadd.f32 %v1991, %v2043
      %v2092 = vadd.f32 %v1992, %v2044
      %v2093 = vadd.f32 %v1993, %v2045
      %v2094 = vadd.f32 %v1994, %v2046
      %v2095 = vadd.f32 %v1995, %v2047
      %v2096 = vadd.f32 %v1996, %v2048
      %v2097 = vadd.f32 %v1997, %v2049
      %v2098 = vadd.f32 %v1998, %v2050
      %v2099 = vadd.f32 %v1999, %v2051
      %v2100 = vadd.f32 %v2000, %v2052
      %v2101 = vadd.f32 %v2001, %v2053
      %v2102 = vadd.f32 %v2002, %v2054
      %v2103 = vadd.f32 %v2003, %v2055
      %v2104 = vadd.f32 %v2004, %v2056
      %v2105 = vadd.f32 %v2005, %v2057
      %v2106 = vadd.f32 %v2006, %v2058
      %v2107 = vlaneseq
      %v2108 = vshrl.u32 %v2107, 7
      %v2109 = vsub.s32 0, %v2108
      %v2110 = vrot.slane %v561, %v2109
      %v2111 = vmul.f32 %v512, %v2110
      %v2112 = vmul.f32 %v513, %v2110
      %v2113 = vmul.f32 %v514, %v2110
      %v2114 = vmul.f32 %v515, %v2110
      %v2115 = vmul.f32 %v516, %v2110
      %v2116 = vmul.f32 %v517, %v2110
      %v2117 = vmul.f32 %v518, %v2110
      %v2118 = vmul.f32 %v519, %v2110
      %v2119 = vmul.f32 %v520, %v2110
      %v2120 = vmul.f32 %v521, %v2110
      %v2121 = vmul.f32 %v522, %v2110
      %v2122 = vmul.f32 %v523, %v2110
      %v2123 = vmul.f32 %v524, %v2110
      %v2124 = vmul.f32 %v525, %v2110
      %v2125 = vmul.f32 %v526, %v2110
      %v2126 = vmul.f32 %v527, %v2110
      %v2127 = vmul.f32 %v528, %v2110
      %v2128 = vmul.f32 %v529, %v2110
      %v2129 = vmul.f32 %v530, %v2110
      %v2130 = vmul.f32 %v531, %v2110
      %v2131 = vmul.f32 %v532, %v2110
      %v2132 = vmul.f32 %v533, %v2110
      %v2133 = vmul.f32 %v534, %v2110
      %v2134 = vmul.f32 %v535, %v2110
      %v2135 = vmul.f32 %v536, %v2110
      %v2136 = vmul.f32 %v537, %v2110
      %v2137 = vmul.f32 %v538, %v2110
      %v2138 = vmul.f32 %v539, %v2110
      %v2139 = vmul.f32 %v540, %v2110
      %v2140 = vmul.f32 %v541, %v2110
      %v2141 = vmul.f32 %v542, %v2110
      %v2142 = vmul.f32 %v543, %v2110
      %v2143 = vmul.f32 %v544, %v2110
      %v2144 = vmul.f32 %v545, %v2110
      %v2145 = vmul.f32 %v546, %v2110
      %v2146 = vmul.f32 %v547, %v2110
      %v2147 = vmul.f32 %v548, %v2110
      %v2148 = vmul.f32 %v549, %v2110
      %v2149 = vmul.f32 %v550, %v2110
      %v2150 = vmul.f32 %v551, %v2110
      %v2151 = vmul.f32 %v552, %v2110
      %v2152 = vmul.f32 %v553, %v2110
      %v2153 = vmul.f32 %v554, %v2110
      %v2154 = vmul.f32 %v555, %v2110
      %v2155 = vmul.f32 %v556, %v2110
      %v2156 = vmul.f32 %v557, %v2110
      %v2157 = vmul.f32 %v558, %v2110
      %v2158 = vmul.f32 %v559, %v2110
      %v2207 = vrot.slane %v2111, 1
      %v2208 = vrot.slane %v2112, 1
      %v2209 = vsel %vm1030, %v2207, %v2208
      %v2210 = vrot.slane %v2113, 1
      %v2211 = vsel %vm1030, %v2208, %v2210
      %v2212 = vrot.slane %v2114, 1
      %v2213 = vrot.slane %v2115, 1
      %v2214 = vsel %vm1030, %v2212, %v2213
      %v2215 = vrot.slane %v2116, 1
      %v2216 = vsel %vm1030, %v2213, %v2215
      %v2217 = vrot.slane %v2117, 1
      %v2218 = vrot.slane %v2118, 1
      %v2219 = vsel %vm1030, %v2217, %v2218
      %v2220 = vrot.slane %v2119, 1
      %v2221 = vsel %vm1030, %v2218, %v2220
      %v2222 = vrot.slane %v2120, 1
      %v2223 = vrot.slane %v2121, 1
      %v2224 = vsel %vm1030, %v2222, %v2223
      %v2225 = vrot.slane %v2122, 1
      %v2226 = vsel %vm1030, %v2223, %v2225
      %v2227 = vrot.slane %v2123, 1
      %v2228 = vrot.slane %v2124, 1
      %v2229 = vsel %vm1030, %v2227, %v2228
      %v2230 = vrot.slane %v2125, 1
      %v2231 = vsel %vm1030, %v2228, %v2230
      %v2232 = vrot.slane %v2126, 1
      %v2233 = vrot.slane %v2127, 1
      %v2234 = vsel %vm1030, %v2232, %v2233
      %v2235 = vrot.slane %v2128, 1
      %v2236 = vsel %vm1030, %v2233, %v2235
      %v2237 = vrot.slane %v2129, 1
      %v2238 = vrot.slane %v2130, 1
      %v2239 = vsel %vm1030, %v2237, %v2238
      %v2240 = vrot.slane %v2131, 1
      %v2241 = vsel %vm1030, %v2238, %v2240
      %v2242 = vrot.slane %v2132, 1
      %v2243 = vrot.slane %v2133, 1
      %v2244 = vsel %vm1030, %v2242, %v2243
      %v2245 = vrot.slane %v2134, 1
      %v2246 = vsel %vm1030, %v2243, %v2245
      %v2247 = vrot.slane %v2135, 1
      %v2248 = vrot.slane %v2136, 1
      %v2249 = vsel %vm1030, %v2247, %v2248
      %v2250 = vrot.slane %v2137, 1
      %v2251 = vsel %vm1030, %v2248, %v2250
      %v2252 = vrot.slane %v2138, 1
      %v2253 = vrot.slane %v2139, 1
      %v2254 = vsel %vm1030, %v2252, %v2253
      %v2255 = vrot.slane %v2140, 1
      %v2256 = vsel %vm1030, %v2253, %v2255
      %v2257 = vrot.slane %v2141, 1
      %v2258 = vrot.slane %v2142, 1
      %v2259 = vsel %vm1030, %v2257, %v2258
      %v2260 = vrot.slane %v2143, 1
      %v2261 = vsel %vm1030, %v2258, %v2260
      %v2262 = vrot.slane %v2144, 1
      %v2263 = vrot.slane %v2145, 1
      %v2264 = vsel %vm1030, %v2262, %v2263
      %v2265 = vrot.slane %v2146, 1
      %v2266 = vsel %vm1030, %v2263, %v2265
      %v2267 = vrot.slane %v2147, 1
      %v2268 = vrot.slane %v2148, 1
      %v2269 = vsel %vm1030, %v2267, %v2268
      %v2270 = vrot.slane %v2149, 1
      %v2271 = vsel %vm1030, %v2268, %v2270
      %v2272 = vrot.slane %v2150, 1
      %v2273 = vrot.slane %v2151, 1
      %v2274 = vsel %vm1030, %v2272, %v2273
      %v2275 = vrot.slane %v2152, 1
      %v2276 = vsel %vm1030, %v2273, %v2275
      %v2277 = vrot.slane %v2153, 1
      %v2278 = vrot.slane %v2154, 1
      %v2279 = vsel %vm1030, %v2277, %v2278
      %v2280 = vrot.slane %v2155, 1
      %v2281 = vsel %vm1030, %v2278, %v2280
      %v2282 = vrot.slane %v2156, 1
      %v2283 = vrot.slane %v2157, 1
      %v2284 = vsel %vm1030, %v2282, %v2283
      %v2285 = vrot.slane %v2158, 1
      %v2286 = vsel %vm1030, %v2283, %v2285
      %v2335 = vadd.f32 %v2059, %v2209
      %v2336 = vadd.f32 %v2060, %v2211
      %v2337 = vadd.f32 %v2061, %v2210
      %v2338 = vadd.f32 %v2062, %v2214
      %v2339 = vadd.f32 %v2063, %v2216
      %v2340 = vadd.f32 %v2064, %v2215
      %v2341 = vadd.f32 %v2065, %v2219
      %v2342 = vadd.f32 %v2066, %v2221
      %v2343 = vadd.f32 %v2067, %v2220
      %v2344 = vadd.f32 %v2068, %v2224
      %v2345 = vadd.f32 %v2069, %v2226
      %v2346 = vadd.f32 %v2070, %v2225
      %v2347 = vadd.f32 %v2071, %v2229
      %v2348 = vadd.f32 %v2072, %v2231
      %v2349 = vadd.f32 %v2073, %v2230
      %v2350 = vadd.f32 %v2074, %v2234
      %v2351 = vadd.f32 %v2075, %v2236
      %v2352 = vadd.f32 %v2076, %v2235
      %v2353 = vadd.f32 %v2077, %v2239
      %v2354 = vadd.f32 %v2078, %v2241
      %v2355 = vadd.f32 %v2079, %v2240
      %v2356 = vadd.f32 %v2080, %v2244
      %v2357 = vadd.f32 %v2081, %v2246
      %v2358 = vadd.f32 %v2082, %v2245
      %v2359 = vadd.f32 %v2083, %v2249
      %v2360 = vadd.f32 %v2084, %v2251
      %v2361 = vadd.f32 %v2085, %v2250
      %v2362 = vadd.f32 %v2086, %v2254
      %v2363 = vadd.f32 %v2087, %v2256
      %v2364 = vadd.f32 %v2088, %v2255
      %v2365 = vadd.f32 %v2089, %v2259
      %v2366 = vadd.f32 %v2090, %v2261
      %v2367 = vadd.f32 %v2091, %v2260
      %v2368 = vadd.f32 %v2092, %v2264
      %v2369 = vadd.f32 %v2093, %v2266
      %v2370 = vadd.f32 %v2094, %v2265
      %v2371 = vadd.f32 %v2095, %v2269
      %v2372 = vadd.f32 %v2096, %v2271
      %v2373 = vadd.f32 %v2097, %v2270
      %v2374 = vadd.f32 %v2098, %v2274
      %v2375 = vadd.f32 %v2099, %v2276
      %v2376 = vadd.f32 %v2100, %v2275
      %v2377 = vadd.f32 %v2101, %v2279
      %v2378 = vadd.f32 %v2102, %v2281
      %v2379 = vadd.f32 %v2103, %v2280
      %v2380 = vadd.f32 %v2104, %v2284
      %v2381 = vadd.f32 %v2105, %v2286
      %v2382 = vadd.f32 %v2106, %v2285
      %v2431 = vrot.slane %v2335, 1
      %v2432 = vrot.slane %v2336, 1
      %v2433 = vsel %vm1030, %v2431, %v2432
      %v2434 = vrot.slane %v2337, 1
      %v2435 = vsel %vm1030, %v2432, %v2434
      %v2436 = vrot.slane %v2338, 1
      %v2437 = vrot.slane %v2339, 1
      %v2438 = vsel %vm1030, %v2436, %v2437
      %v2439 = vrot.slane %v2340, 1
      %v2440 = vsel %vm1030, %v2437, %v2439
      %v2441 = vrot.slane %v2341, 1
      %v2442 = vrot.slane %v2342, 1
      %v2443 = vsel %vm1030, %v2441, %v2442
      %v2444 = vrot.slane %v2343, 1
      %v2445 = vsel %vm1030, %v2442, %v2444
      %v2446 = vrot.slane %v2344, 1
      %v2447 = vrot.slane %v2345, 1
      %v2448 = vsel %vm1030, %v2446, %v2447
      %v2449 = vrot.slane %v2346, 1
      %v2450 = vsel %vm1030, %v2447, %v2449
      %v2451 = vrot.slane %v2347, 1
      %v2452 = vrot.slane %v2348, 1
      %v2453 = vsel %vm1030, %v2451, %v2452
      %v2454 = vrot.slane %v2349, 1
      %v2455 = vsel %vm1030, %v2452, %v2454
      %v2456 = vrot.slane %v2350, 1
      %v2457 = vrot.slane %v2351, 1
      %v2458 = vsel %vm1030, %v2456, %v2457
      %v2459 = vrot.slane %v2352, 1
      %v2460 = vsel %vm1030, %v2457, %v2459
      %v2461 = vrot.slane %v2353, 1
      %v2462 = vrot.slane %v2354, 1
      %v2463 = vsel %vm1030, %v2461, %v2462
      %v2464 = vrot.slane %v2355, 1
      %v2465 = vsel %vm1030, %v2462, %v2464
      %v2466 = vrot.slane %v2356, 1
      %v2467 = vrot.slane %v2357, 1
      %v2468 = vsel %vm1030, %v2466, %v2467
      %v2469 = vrot.slane %v2358, 1
      %v2470 = vsel %vm1030, %v2467, %v2469
      %v2471 = vrot.slane %v2359, 1
      %v2472 = vrot.slane %v2360, 1
      %v2473 = vsel %vm1030, %v2471, %v2472
      %v2474 = vrot.slane %v2361, 1
      %v2475 = vsel %vm1030, %v2472, %v2474
      %v2476 = vrot.slane %v2362, 1
      %v2477 = vrot.slane %v2363, 1
      %v2478 = vsel %vm1030, %v2476, %v2477
      %v2479 = vrot.slane %v2364, 1
      %v2480 = vsel %vm1030, %v2477, %v2479
      %v2481 = vrot.slane %v2365, 1
      %v2482 = vrot.slane %v2366, 1
      %v2483 = vsel %vm1030, %v2481, %v2482
      %v2484 = vrot.slane %v2367, 1
      %v2485 = vsel %vm1030, %v2482, %v2484
      %v2486 = vrot.slane %v2368, 1
      %v2487 = vrot.slane %v2369, 1
      %v2488 = vsel %vm1030, %v2486, %v2487
      %v2489 = vrot.slane %v2370, 1
      %v2490 = vsel %vm1030, %v2487, %v2489
      %v2491 = vrot.slane %v2371, 1
      %v2492 = vrot.slane %v2372, 1
      %v2493 = vsel %vm1030, %v2491, %v2492
      %v2494 = vrot.slane %v2373, 1
      %v2495 = vsel %vm1030, %v2492, %v2494
      %v2496 = vrot.slane %v2374, 1
      %v2497 = vrot.slane %v2375, 1
      %v2498 = vsel %vm1030, %v2496, %v2497
      %v2499 = vrot.slane %v2376, 1
      %v2500 = vsel %vm1030, %v2497, %v2499
      %v2501 = vrot.slane %v2377, 1
      %v2502 = vrot.slane %v2378, 1
      %v2503 = vsel %vm1030, %v2501, %v2502
      %v2504 = vrot.slane %v2379, 1
      %v2505 = vsel %vm1030, %v2502, %v2504
      %v2506 = vrot.slane %v2380, 1
      %v2507 = vrot.slane %v2381, 1
      %v2508 = vsel %vm1030, %v2506, %v2507
      %v2509 = vrot.slane %v2382, 1
      %v2510 = vsel %vm1030, %v2507, %v2509
      %v2543 = vpack.c.bf16 %v2435, %v2433
      %v2544 = vpack.c.bf16 %v2440, %v2438
      %v2545 = vpack.c.bf16 %v2445, %v2443
      %v2546 = vpack.c.bf16 %v2450, %v2448
      %v2547 = vpack.c.bf16 %v2455, %v2453
      %v2548 = vpack.c.bf16 %v2460, %v2458
      %v2549 = vpack.c.bf16 %v2465, %v2463
      %v2550 = vpack.c.bf16 %v2470, %v2468
      %v2551 = vpack.c.bf16 %v2475, %v2473
      %v2552 = vpack.c.bf16 %v2480, %v2478
      %v2553 = vpack.c.bf16 %v2485, %v2483
      %v2554 = vpack.c.bf16 %v2490, %v2488
      %v2555 = vpack.c.bf16 %v2495, %v2493
      %v2556 = vpack.c.bf16 %v2500, %v2498
      %v2557 = vpack.c.bf16 %v2505, %v2503
      %v2558 = vpack.c.bf16 %v2510, %v2508
      %v2607 = vrot.slane %v509, 1
      %v2608 = vrot.slane %v510, 1
      %v2609 = vsel %vm1030, %v2607, %v2608
      %v2610 = vrot.slane %v511, 1
      %v2611 = vsel %vm1030, %v2608, %v2610
      %v2612 = vrot.slane %v512, 1
      %v2613 = vrot.slane %v513, 1
      %v2614 = vsel %vm1030, %v2612, %v2613
      %v2615 = vrot.slane %v514, 1
      %v2616 = vsel %vm1030, %v2613, %v2615
      %v2617 = vrot.slane %v515, 1
      %v2618 = vrot.slane %v516, 1
      %v2619 = vsel %vm1030, %v2617, %v2618
      %v2620 = vrot.slane %v517, 1
      %v2621 = vsel %vm1030, %v2618, %v2620
      %v2622 = vrot.slane %v518, 1
      %v2623 = vrot.slane %v519, 1
      %v2624 = vsel %vm1030, %v2622, %v2623
      %v2625 = vrot.slane %v520, 1
      %v2626 = vsel %vm1030, %v2623, %v2625
      %v2627 = vrot.slane %v521, 1
      %v2628 = vrot.slane %v522, 1
      %v2629 = vsel %vm1030, %v2627, %v2628
      %v2630 = vrot.slane %v523, 1
      %v2631 = vsel %vm1030, %v2628, %v2630
      %v2632 = vrot.slane %v524, 1
      %v2633 = vrot.slane %v525, 1
      %v2634 = vsel %vm1030, %v2632, %v2633
      %v2635 = vrot.slane %v526, 1
      %v2636 = vsel %vm1030, %v2633, %v2635
      %v2637 = vrot.slane %v527, 1
      %v2638 = vrot.slane %v528, 1
      %v2639 = vsel %vm1030, %v2637, %v2638
      %v2640 = vrot.slane %v529, 1
      %v2641 = vsel %vm1030, %v2638, %v2640
      %v2642 = vrot.slane %v530, 1
      %v2643 = vrot.slane %v531, 1
      %v2644 = vsel %vm1030, %v2642, %v2643
      %v2645 = vrot.slane %v532, 1
      %v2646 = vsel %vm1030, %v2643, %v2645
      %v2647 = vrot.slane %v533, 1
      %v2648 = vrot.slane %v534, 1
      %v2649 = vsel %vm1030, %v2647, %v2648
      %v2650 = vrot.slane %v535, 1
      %v2651 = vsel %vm1030, %v2648, %v2650
      %v2652 = vrot.slane %v536, 1
      %v2653 = vrot.slane %v537, 1
      %v2654 = vsel %vm1030, %v2652, %v2653
      %v2655 = vrot.slane %v538, 1
      %v2656 = vsel %vm1030, %v2653, %v2655
      %v2657 = vrot.slane %v539, 1
      %v2658 = vrot.slane %v540, 1
      %v2659 = vsel %vm1030, %v2657, %v2658
      %v2660 = vrot.slane %v541, 1
      %v2661 = vsel %vm1030, %v2658, %v2660
      %v2662 = vrot.slane %v542, 1
      %v2663 = vrot.slane %v543, 1
      %v2664 = vsel %vm1030, %v2662, %v2663
      %v2665 = vrot.slane %v544, 1
      %v2666 = vsel %vm1030, %v2663, %v2665
      %v2667 = vrot.slane %v545, 1
      %v2668 = vrot.slane %v546, 1
      %v2669 = vsel %vm1030, %v2667, %v2668
      %v2670 = vrot.slane %v547, 1
      %v2671 = vsel %vm1030, %v2668, %v2670
      %v2672 = vrot.slane %v548, 1
      %v2673 = vrot.slane %v549, 1
      %v2674 = vsel %vm1030, %v2672, %v2673
      %v2675 = vrot.slane %v550, 1
      %v2676 = vsel %vm1030, %v2673, %v2675
      %v2677 = vrot.slane %v551, 1
      %v2678 = vrot.slane %v552, 1
      %v2679 = vsel %vm1030, %v2677, %v2678
      %v2680 = vrot.slane %v553, 1
      %v2681 = vsel %vm1030, %v2678, %v2680
      %v2682 = vrot.slane %v554, 1
      %v2683 = vrot.slane %v555, 1
      %v2684 = vsel %vm1030, %v2682, %v2683
      %v2685 = vrot.slane %v556, 1
      %v2686 = vsel %vm1030, %v2683, %v2685
      %v2719 = vpack.c.bf16 %v2611, %v2609
      %v2720 = vpack.c.bf16 %v2616, %v2614
      %v2721 = vpack.c.bf16 %v2621, %v2619
      %v2722 = vpack.c.bf16 %v2626, %v2624
      %v2723 = vpack.c.bf16 %v2631, %v2629
      %v2724 = vpack.c.bf16 %v2636, %v2634
      %v2725 = vpack.c.bf16 %v2641, %v2639
      %v2726 = vpack.c.bf16 %v2646, %v2644
      %v2727 = vpack.c.bf16 %v2651, %v2649
      %v2728 = vpack.c.bf16 %v2656, %v2654
      %v2729 = vpack.c.bf16 %v2661, %v2659
      %v2730 = vpack.c.bf16 %v2666, %v2664
      %v2731 = vpack.c.bf16 %v2671, %v2669
      %v2732 = vpack.c.bf16 %v2676, %v2674
      %v2733 = vpack.c.bf16 %v2681, %v2679
      %v2734 = vpack.c.bf16 %v2686, %v2684
      %v2735 = vld [vmem:[%s5] sm:$0x3]
      %v2736 = vld [vmem:[%s7] sm:$0x1]
      %v2738 = vlaneseq
      %v2739 = vshrl.u32 %v2738, 7
      %v2740 = vsub.s32 0, %v2739
      %v2741 = vrot.slane %v2736, %v2740
      %vm2743 = vcmask 31744
      %v2745 = vsel %vm2743, %v2543, 0
      %v2748 = vsel %vm2743, %v2544, 0
      %v2751 = vsel %vm2743, %v2545, 0
      %v2754 = vsel %vm2743, %v2546, 0
      %v2757 = vsel %vm2743, %v2547, 0
      %v2760 = vsel %vm2743, %v2548, 0
      %v2763 = vsel %vm2743, %v2549, 0
      %v2766 = vsel %vm2743, %v2550, 0
      %v2769 = vsel %vm2743, %v2551, 0
      %v2772 = vsel %vm2743, %v2552, 0
      %v2775 = vsel %vm2743, %v2553, 0
      %v2778 = vsel %vm2743, %v2554, 0
      %v2781 = vsel %vm2743, %v2555, 0
      %v2784 = vsel %vm2743, %v2556, 0
      %v2787 = vsel %vm2743, %v2557, 0
      %v2790 = vsel %vm2743, %v2558, 0
      %vm2792 = vcmask 1041408
      %v2794 = vsel %vm2792, %v2735, 0
      %2796 = vmatprep.subr.bf16.mxu0 0
      %2797 = vmatpush1.bf16.msra.mxu0 %v2794
      %2798 = vmatprep.subr.bf16.mxu0 0
      %2799 = vmatpush1.bf16.msra.mxu0 0
      %2800 = vmatprep.subr.bf16.mxu0 0
      %2801 = vmatpush1.bf16.msra.mxu0 0
      %2802 = vmatprep.subr.bf16.mxu0 0
      %2803 = vmatpush1.bf16.msra.mxu0 0
      %2804 = vmatprep.subr.bf16.mxu0 0
      %2805 = vmatpush1.bf16.msra.mxu0 0
      %2806 = vmatprep.subr.bf16.mxu0 0
      %2807 = vmatpush1.bf16.msra.mxu0 0
      %2808 = vmatprep.subr.bf16.mxu0 0
      %2809 = vmatpush1.bf16.msra.mxu0 0
      %2810 = vmatprep.subr.bf16.mxu0 0
      %2811 = vmatpush1.bf16.msra.mxu0 0
      %2812 = vmatprep.subr.bf16.mxu0 0
      %2813 = vmatpush1.bf16.msra.mxu0 0
      %2814 = vmatprep.subr.bf16.mxu0 0
      %2815 = vmatpush1.bf16.msra.mxu0 0
      %2816 = vmatprep.subr.bf16.mxu0 0
      %2817 = vmatpush1.bf16.msra.mxu0 0
      %2818 = vmatprep.subr.bf16.mxu0 0
      %2819 = vmatpush1.bf16.msra.mxu0 0
      %2820 = vmatprep.subr.bf16.mxu0 0
      %2821 = vmatpush1.bf16.msra.mxu0 0
      %2822 = vmatprep.subr.bf16.mxu0 0
      %2823 = vmatpush1.bf16.msra.mxu0 0
      %2824 = vmatprep.subr.bf16.mxu0 0
      %2825 = vmatpush1.bf16.msra.mxu0 0
      %2826 = vmatprep.subr.bf16.mxu0 0
      %2827 = vmatpush1.bf16.msra.mxu0 0
      %2828 = vmatprep.mubr.bf16.mxu0 0
      %2829 = vmatmul.mubr.bf16.gmra.mrb[0].mxu0 %v2745
      %v2830 = vpop.f32.mrb[0].mxu0
      %v2831 = vadd.f32 %v2741, %v2830
      %v2832 = vpop.f32.mrb[0].mxu0
      %v2833 = vpop.f32.mrb[0].mxu0
      %v2834 = vadd.f32 %v2741, %v2833
      %v2835 = vpop.f32.mrb[0].mxu0
      %2836 = vmatprep.mubr.bf16.mxu0 0
      %2837 = vmatmul.mubr.bf16.gmra.mrb[0].mxu0 %v2748
      %v2838 = vpop.f32.mrb[0].mxu0
      %v2839 = vadd.f32 %v2741, %v2838
      %v2840 = vpop.f32.mrb[0].mxu0
      %v2841 = vpop.f32.mrb[0].mxu0
      %v2842 = vadd.f32 %v2741, %v2841
      %v2843 = vpop.f32.mrb[0].mxu0
      %2844 = vmatprep.mubr.bf16.mxu0 0
      %2845 = vmatmul.mubr.bf16.gmra.mrb[0].mxu0 %v2751
      %v2846 = vpop.f32.mrb[0].mxu0
      %v2847 = vadd.f32 %v2741, %v2846
      %v2848 = vpop.f32.mrb[0].mxu0
      %v2849 = vpop.f32.mrb[0].mxu0
      %v2850 = vadd.f32 %v2741, %v2849
      %v2851 = vpop.f32.mrb[0].mxu0
      %2852 = vmatprep.mubr.bf16.mxu0 0
      %2853 = vmatmul.mubr.bf16.gmra.mrb[0].mxu0 %v2754
      %v2854 = vpop.f32.mrb[0].mxu0
      %v2855 = vadd.f32 %v2741, %v2854
      %v2856 = vpop.f32.mrb[0].mxu0
      %v2857 = vpop.f32.mrb[0].mxu0
      %v2858 = vadd.f32 %v2741, %v2857
      %v2859 = vpop.f32.mrb[0].mxu0
      %2860 = vmatprep.mubr.bf16.mxu0 0
      %2861 = vmatmul.mubr.bf16.gmra.mrb[0].mxu0 %v2757
      %v2862 = vpop.f32.mrb[0].mxu0
      %v2863 = vadd.f32 %v2741, %v2862
      %v2864 = vpop.f32.mrb[0].mxu0
      %v2865 = vpop.f32.mrb[0].mxu0
      %v2866 = vadd.f32 %v2741, %v2865
      %v2867 = vpop.f32.mrb[0].mxu0
      %2868 = vmatprep.mubr.bf16.mxu0 0
      %2869 = vmatmul.mubr.bf16.gmra.mrb[0].mxu0 %v2760
      %v2870 = vpop.f32.mrb[0].mxu0
      %v2871 = vadd.f32 %v2741, %v2870
      %v2872 = vpop.f32.mrb[0].mxu0
      %v2873 = vpop.f32.mrb[0].mxu0
      %v2874 = vadd.f32 %v2741, %v2873
      %v2875 = vpop.f32.mrb[0].mxu0
      %2876 = vmatprep.mubr.bf16.mxu0 0
      %2877 = vmatmul.mubr.bf16.gmra.mrb[0].mxu0 %v2763
      %v2878 = vpop.f32.mrb[0].mxu0
      %v2879 = vadd.f32 %v2741, %v2878
      %v2880 = vpop.f32.mrb[0].mxu0
      %v2881 = vpop.f32.mrb[0].mxu0
      %v2882 = vadd.f32 %v2741, %v2881
      %v2883 = vpop.f32.mrb[0].mxu0
      %2884 = vmatprep.mubr.bf16.mxu0 0
      %2885 = vmatmul.mubr.bf16.gmra.mrb[0].mxu0 %v2766
      %v2886 = vpop.f32.mrb[0].mxu0
      %v2887 = vadd.f32 %v2741, %v2886
      %v2888 = vpop.f32.mrb[0].mxu0
      %v2889 = vpop.f32.mrb[0].mxu0
      %v2890 = vadd.f32 %v2741, %v2889
      %v2891 = vpop.f32.mrb[0].mxu0
      %2892 = vmatprep.mubr.bf16.mxu0 0
      %2893 = vmatmul.mubr.bf16.gmra.mrb[0].mxu0 %v2769
      %v2894 = vpop.f32.mrb[0].mxu0
      %v2895 = vadd.f32 %v2741, %v2894
      %v2896 = vpop.f32.mrb[0].mxu0
      %v2897 = vpop.f32.mrb[0].mxu0
      %v2898 = vadd.f32 %v2741, %v2897
      %v2899 = vpop.f32.mrb[0].mxu0
      %2900 = vmatprep.mubr.bf16.mxu0 0
      %2901 = vmatmul.mubr.bf16.gmra.mrb[0].mxu0 %v2772
      %v2902 = vpop.f32.mrb[0].mxu0
      %v2903 = vadd.f32 %v2741, %v2902
      %v2904 = vpop.f32.mrb[0].mxu0
      %v2905 = vpop.f32.mrb[0].mxu0
      %v2906 = vadd.f32 %v2741, %v2905
      %v2907 = vpop.f32.mrb[0].mxu0
      %2908 = vmatprep.mubr.bf16.mxu0 0
      %2909 = vmatmul.mubr.bf16.gmra.mrb[0].mxu0 %v2775
      %v2910 = vpop.f32.mrb[0].mxu0
      %v2911 = vadd.f32 %v2741, %v2910
      %v2912 = vpop.f32.mrb[0].mxu0
      %v2913 = vpop.f32.mrb[0].mxu0
      %v2914 = vadd.f32 %v2741, %v2913
      %v2915 = vpop.f32.mrb[0].mxu0
      %2916 = vmatprep.mubr.bf16.mxu0 0
      %2917 = vmatmul.mubr.bf16.gmra.mrb[0].mxu0 %v2778
      %v2918 = vpop.f32.mrb[0].mxu0
      %v2919 = vadd.f32 %v2741, %v2918
      %v2920 = vpop.f32.mrb[0].mxu0
      %v2921 = vpop.f32.mrb[0].mxu0
      %v2922 = vadd.f32 %v2741, %v2921
      %v2923 = vpop.f32.mrb[0].mxu0
      %2924 = vmatprep.mubr.bf16.mxu0 0
      %2925 = vmatmul.mubr.bf16.gmra.mrb[0].mxu0 %v2781
      %v2926 = vpop.f32.mrb[0].mxu0
      %v2927 = vadd.f32 %v2741, %v2926
      %v2928 = vpop.f32.mrb[0].mxu0
      %v2929 = vpop.f32.mrb[0].mxu0
      %v2930 = vadd.f32 %v2741, %v2929
      %v2931 = vpop.f32.mrb[0].mxu0
      %2932 = vmatprep.mubr.bf16.mxu0 0
      %2933 = vmatmul.mubr.bf16.gmra.mrb[0].mxu0 %v2784
      %v2934 = vpop.f32.mrb[0].mxu0
      %v2935 = vadd.f32 %v2741, %v2934
      %v2936 = vpop.f32.mrb[0].mxu0
      %v2937 = vpop.f32.mrb[0].mxu0
      %v2938 = vadd.f32 %v2741, %v2937
      %v2939 = vpop.f32.mrb[0].mxu0
      %2940 = vmatprep.mubr.bf16.mxu0 0
      %2941 = vmatmul.mubr.bf16.gmra.mrb[0].mxu0 %v2787
      %v2942 = vpop.f32.mrb[0].mxu0
      %v2943 = vadd.f32 %v2741, %v2942
      %v2944 = vpop.f32.mrb[0].mxu0
      %v2945 = vpop.f32.mrb[0].mxu0
      %v2946 = vadd.f32 %v2741, %v2945
      %v2947 = vpop.f32.mrb[0].mxu0
      %2948 = vmatprep.mubr.bf16.mxu0 0
      %2949 = vmatmul.mubr.bf16.gmra.mrb[0].mxu0 %v2790
      %v2950 = vpop.f32.mrb[0].mxu0
      %v2951 = vadd.f32 %v2741, %v2950
      %v2952 = vpop.f32.mrb[0].mxu0
      %v2953 = vpop.f32.mrb[0].mxu0
      %v2954 = vadd.f32 %v2741, %v2953
      %v2955 = vpop.f32.mrb[0].mxu0
      %2956 = vdwg.mxu0
      %v2957 = vmul.f32 %v2831, 2.0
      %v2958 = vmul.f32 %v2834, 2.0
      %v2959 = vmul.f32 %v2839, 2.0
      %v2960 = vmul.f32 %v2842, 2.0
      %v2961 = vmul.f32 %v2847, 2.0
      %v2962 = vmul.f32 %v2850, 2.0
      %v2963 = vmul.f32 %v2855, 2.0
      %v2964 = vmul.f32 %v2858, 2.0
      %v2965 = vmul.f32 %v2863, 2.0
      %v2966 = vmul.f32 %v2866, 2.0
      %v2967 = vmul.f32 %v2871, 2.0
      %v2968 = vmul.f32 %v2874, 2.0
      %v2969 = vmul.f32 %v2879, 2.0
      %v2970 = vmul.f32 %v2882, 2.0
      %v2971 = vmul.f32 %v2887, 2.0
      %v2972 = vmul.f32 %v2890, 2.0
      %v2973 = vmul.f32 %v2895, 2.0
      %v2974 = vmul.f32 %v2898, 2.0
      %v2975 = vmul.f32 %v2903, 2.0
      %v2976 = vmul.f32 %v2906, 2.0
      %v2977 = vmul.f32 %v2911, 2.0
      %v2978 = vmul.f32 %v2914, 2.0
      %v2979 = vmul.f32 %v2919, 2.0
      %v2980 = vmul.f32 %v2922, 2.0
      %v2981 = vmul.f32 %v2927, 2.0
      %v2982 = vmul.f32 %v2930, 2.0
      %v2983 = vmul.f32 %v2935, 2.0
      %v2984 = vmul.f32 %v2938, 2.0
      %v2985 = vmul.f32 %v2943, 2.0
      %v2986 = vmul.f32 %v2946, 2.0
      %v2987 = vmul.f32 %v2951, 2.0
      %v2988 = vmul.f32 %v2954, 2.0
      %v2989 = vxor.u32 %v2957, 2147483648
      %v2990 = vxor.u32 %v2958, 2147483648
      %v2991 = vxor.u32 %v2959, 2147483648
      %v2992 = vxor.u32 %v2960, 2147483648
      %v2993 = vxor.u32 %v2961, 2147483648
      %v2994 = vxor.u32 %v2962, 2147483648
      %v2995 = vxor.u32 %v2963, 2147483648
      %v2996 = vxor.u32 %v2964, 2147483648
      %v2997 = vxor.u32 %v2965, 2147483648
      %v2998 = vxor.u32 %v2966, 2147483648
      %v2999 = vxor.u32 %v2967, 2147483648
      %v3000 = vxor.u32 %v2968, 2147483648
      %v3001 = vxor.u32 %v2969, 2147483648
      %v3002 = vxor.u32 %v2970, 2147483648
      %v3003 = vxor.u32 %v2971, 2147483648
      %v3004 = vxor.u32 %v2972, 2147483648
      %v3005 = vxor.u32 %v2973, 2147483648
      %v3006 = vxor.u32 %v2974, 2147483648
      %v3007 = vxor.u32 %v2975, 2147483648
      %v3008 = vxor.u32 %v2976, 2147483648
      %v3009 = vxor.u32 %v2977, 2147483648
      %v3010 = vxor.u32 %v2978, 2147483648
      %v3011 = vxor.u32 %v2979, 2147483648
      %v3012 = vxor.u32 %v2980, 2147483648
      %v3013 = vxor.u32 %v2981, 2147483648
      %v3014 = vxor.u32 %v2982, 2147483648
      %v3015 = vxor.u32 %v2983, 2147483648
      %v3016 = vxor.u32 %v2984, 2147483648
      %v3017 = vxor.u32 %v2985, 2147483648
      %v3018 = vxor.u32 %v2986, 2147483648
      %v3019 = vxor.u32 %v2987, 2147483648
      %v3020 = vxor.u32 %v2988, 2147483648
      %v3021 = vmul.f32 %v2989, 1.442695
      %v3022 = vpow.pop %v3021
      %v3023 = vmul.f32 %v2990, 1.442695
      %v3024 = vpow.pop %v3023
      %v3025 = vmul.f32 %v2991, 1.442695
      %v3026 = vpow.pop %v3025
      %v3027 = vmul.f32 %v2992, 1.442695
      %v3028 = vpow.pop %v3027
      %v3029 = vmul.f32 %v2993, 1.442695
      %v3030 = vpow.pop %v3029
      %v3031 = vmul.f32 %v2994, 1.442695
      %v3032 = vpow.pop %v3031
      %v3033 = vmul.f32 %v2995, 1.442695
      %v3034 = vpow.pop %v3033
      %v3035 = vmul.f32 %v2996, 1.442695
      %v3036 = vpow.pop %v3035
      %v3037 = vmul.f32 %v2997, 1.442695
      %v3038 = vpow.pop %v3037
      %v3039 = vmul.f32 %v2998, 1.442695
      %v3040 = vpow.pop %v3039
      %v3041 = vmul.f32 %v2999, 1.442695
      %v3042 = vpow.pop %v3041
      %v3043 = vmul.f32 %v3000, 1.442695
      %v3044 = vpow.pop %v3043
      %v3045 = vmul.f32 %v3001, 1.442695
      %v3046 = vpow.pop %v3045
      %v3047 = vmul.f32 %v3002, 1.442695
      %v3048 = vpow.pop %v3047
      %v3049 = vmul.f32 %v3003, 1.442695
      %v3050 = vpow.pop %v3049
      %v3051 = vmul.f32 %v3004, 1.442695
      %v3052 = vpow.pop %v3051
      %v3053 = vmul.f32 %v3005, 1.442695
      %v3054 = vpow.pop %v3053
      %v3055 = vmul.f32 %v3006, 1.442695
      %v3056 = vpow.pop %v3055
      %v3057 = vmul.f32 %v3007, 1.442695
      %v3058 = vpow.pop %v3057
      %v3059 = vmul.f32 %v3008, 1.442695
      %v3060 = vpow.pop %v3059
      %v3061 = vmul.f32 %v3009, 1.442695
      %v3062 = vpow.pop %v3061
      %v3063 = vmul.f32 %v3010, 1.442695
      %v3064 = vpow.pop %v3063
      %v3065 = vmul.f32 %v3011, 1.442695
      %v3066 = vpow.pop %v3065
      %v3067 = vmul.f32 %v3012, 1.442695
      %v3068 = vpow.pop %v3067
      %v3069 = vmul.f32 %v3013, 1.442695
      %v3070 = vpow.pop %v3069
      %v3071 = vmul.f32 %v3014, 1.442695
      %v3072 = vpow.pop %v3071
      %v3073 = vmul.f32 %v3015, 1.442695
      %v3074 = vpow.pop %v3073
      %v3075 = vmul.f32 %v3016, 1.442695
      %v3076 = vpow.pop %v3075
      %v3077 = vmul.f32 %v3017, 1.442695
      %v3078 = vpow.pop %v3077
      %v3079 = vmul.f32 %v3018, 1.442695
      %v3080 = vpow.pop %v3079
      %v3081 = vmul.f32 %v3019, 1.442695
      %v3082 = vpow.pop %v3081
      %v3083 = vmul.f32 %v3020, 1.442695
      %v3084 = vpow.pop %v3083
      %v3085 = vadd.f32 %v3022, 1.0
      %v3086 = vadd.f32 %v3024, 1.0
      %v3087 = vadd.f32 %v3026, 1.0
      %v3088 = vadd.f32 %v3028, 1.0
      %v3089 = vadd.f32 %v3030, 1.0
      %v3090 = vadd.f32 %v3032, 1.0
      %v3091 = vadd.f32 %v3034, 1.0
      %v3092 = vadd.f32 %v3036, 1.0
      %v3093 = vadd.f32 %v3038, 1.0
      %v3094 = vadd.f32 %v3040, 1.0
      %v3095 = vadd.f32 %v3042, 1.0
      %v3096 = vadd.f32 %v3044, 1.0
      %v3097 = vadd.f32 %v3046, 1.0
      %v3098 = vadd.f32 %v3048, 1.0
      %v3099 = vadd.f32 %v3050, 1.0
      %v3100 = vadd.f32 %v3052, 1.0
      %v3101 = vadd.f32 %v3054, 1.0
      %v3102 = vadd.f32 %v3056, 1.0
      %v3103 = vadd.f32 %v3058, 1.0
      %v3104 = vadd.f32 %v3060, 1.0
      %v3105 = vadd.f32 %v3062, 1.0
      %v3106 = vadd.f32 %v3064, 1.0
      %v3107 = vadd.f32 %v3066, 1.0
      %v3108 = vadd.f32 %v3068, 1.0
      %v3109 = vadd.f32 %v3070, 1.0
      %v3110 = vadd.f32 %v3072, 1.0
      %v3111 = vadd.f32 %v3074, 1.0
      %v3112 = vadd.f32 %v3076, 1.0
      %v3113 = vadd.f32 %v3078, 1.0
      %v3114 = vadd.f32 %v3080, 1.0
      %v3115 = vadd.f32 %v3082, 1.0
      %v3116 = vadd.f32 %v3084, 1.0
      %v3117 = vrcp.pop %v3085
      %v3118 = vmul.f32 1.0, %v3117
      %v3119 = vrcp.pop %v3086
      %v3120 = vmul.f32 1.0, %v3119
      %v3121 = vrcp.pop %v3087
      %v3122 = vmul.f32 1.0, %v3121
      %v3123 = vrcp.pop %v3088
      %v3124 = vmul.f32 1.0, %v3123
      %v3125 = vrcp.pop %v3089
      %v3126 = vmul.f32 1.0, %v3125
      %v3127 = vrcp.pop %v3090
      %v3128 = vmul.f32 1.0, %v3127
      %v3129 = vrcp.pop %v3091
      %v3130 = vmul.f32 1.0, %v3129
      %v3131 = vrcp.pop %v3092
      %v3132 = vmul.f32 1.0, %v3131
      %v3133 = vrcp.pop %v3093
      %v3134 = vmul.f32 1.0, %v3133
      %v3135 = vrcp.pop %v3094
      %v3136 = vmul.f32 1.0, %v3135
      %v3137 = vrcp.pop %v3095
      %v3138 = vmul.f32 1.0, %v3137
      %v3139 = vrcp.pop %v3096
      %v3140 = vmul.f32 1.0, %v3139
      %v3141 = vrcp.pop %v3097
      %v3142 = vmul.f32 1.0, %v3141
      %v3143 = vrcp.pop %v3098
      %v3144 = vmul.f32 1.0, %v3143
      %v3145 = vrcp.pop %v3099
      %v3146 = vmul.f32 1.0, %v3145
      %v3147 = vrcp.pop %v3100
      %v3148 = vmul.f32 1.0, %v3147
      %v3149 = vrcp.pop %v3101
      %v3150 = vmul.f32 1.0, %v3149
      %v3151 = vrcp.pop %v3102
      %v3152 = vmul.f32 1.0, %v3151
      %v3153 = vrcp.pop %v3103
      %v3154 = vmul.f32 1.0, %v3153
      %v3155 = vrcp.pop %v3104
      %v3156 = vmul.f32 1.0, %v3155
      %v3157 = vrcp.pop %v3105
      %v3158 = vmul.f32 1.0, %v3157
      %v3159 = vrcp.pop %v3106
      %v3160 = vmul.f32 1.0, %v3159
      %v3161 = vrcp.pop %v3107
      %v3162 = vmul.f32 1.0, %v3161
      %v3163 = vrcp.pop %v3108
      %v3164 = vmul.f32 1.0, %v3163
      %v3165 = vrcp.pop %v3109
      %v3166 = vmul.f32 1.0, %v3165
      %v3167 = vrcp.pop %v3110
      %v3168 = vmul.f32 1.0, %v3167
      %v3169 = vrcp.pop %v3111
      %v3170 = vmul.f32 1.0, %v3169
      %v3171 = vrcp.pop %v3112
      %v3172 = vmul.f32 1.0, %v3171
      %v3173 = vrcp.pop %v3113
      %v3174 = vmul.f32 1.0, %v3173
      %v3175 = vrcp.pop %v3114
      %v3176 = vmul.f32 1.0, %v3175
      %v3177 = vrcp.pop %v3115
      %v3178 = vmul.f32 1.0, %v3177
      %v3179 = vrcp.pop %v3116
      %v3180 = vmul.f32 1.0, %v3179
      %v3181 = vmul.f32 %v2831, %v3118
      %v3182 = vmul.f32 %v2834, %v3120
      %v3183 = vmul.f32 %v2839, %v3122
      %v3184 = vmul.f32 %v2842, %v3124
      %v3185 = vmul.f32 %v2847, %v3126
      %v3186 = vmul.f32 %v2850, %v3128
      %v3187 = vmul.f32 %v2855, %v3130
      %v3188 = vmul.f32 %v2858, %v3132
      %v3189 = vmul.f32 %v2863, %v3134
      %v3190 = vmul.f32 %v2866, %v3136
      %v3191 = vmul.f32 %v2871, %v3138
      %v3192 = vmul.f32 %v2874, %v3140
      %v3193 = vmul.f32 %v2879, %v3142
      %v3194 = vmul.f32 %v2882, %v3144
      %v3195 = vmul.f32 %v2887, %v3146
      %v3196 = vmul.f32 %v2890, %v3148
      %v3197 = vmul.f32 %v2895, %v3150
      %v3198 = vmul.f32 %v2898, %v3152
      %v3199 = vmul.f32 %v2903, %v3154
      %v3200 = vmul.f32 %v2906, %v3156
      %v3201 = vmul.f32 %v2911, %v3158
      %v3202 = vmul.f32 %v2914, %v3160
      %v3203 = vmul.f32 %v2919, %v3162
      %v3204 = vmul.f32 %v2922, %v3164
      %v3205 = vmul.f32 %v2927, %v3166
      %v3206 = vmul.f32 %v2930, %v3168
      %v3207 = vmul.f32 %v2935, %v3170
      %v3208 = vmul.f32 %v2938, %v3172
      %v3209 = vmul.f32 %v2943, %v3174
      %v3210 = vmul.f32 %v2946, %v3176
      %v3211 = vmul.f32 %v2951, %v3178
      %v3212 = vmul.f32 %v2954, %v3180
      %v3213 = vld [vmem:[%s6] sm:$0x3]
      %v3214 = vld [vmem:[%s8] sm:$0x1]
      %v3216 = vlaneseq
      %v3217 = vshrl.u32 %v3216, 7
      %v3218 = vsub.s32 0, %v3217
      %v3219 = vrot.slane %v3214, %v3218
      %v3222 = vsel %vm2743, %v2719, 0
      %v3225 = vsel %vm2743, %v2720, 0
      %v3228 = vsel %vm2743, %v2721, 0
      %v3231 = vsel %vm2743, %v2722, 0
      %v3234 = vsel %vm2743, %v2723, 0
      %v3237 = vsel %vm2743, %v2724, 0
      %v3240 = vsel %vm2743, %v2725, 0
      %v3243 = vsel %vm2743, %v2726, 0
      %v3246 = vsel %vm2743, %v2727, 0
      %v3249 = vsel %vm2743, %v2728, 0
      %v3252 = vsel %vm2743, %v2729, 0
      %v3255 = vsel %vm2743, %v2730, 0
      %v3258 = vsel %vm2743, %v2731, 0
      %v3261 = vsel %vm2743, %v2732, 0
      %v3264 = vsel %vm2743, %v2733, 0
      %v3267 = vsel %vm2743, %v2734, 0
      %v3270 = vsel %vm2792, %v3213, 0
      %3272 = vmatprep.subr.bf16.mxu0 0
      %3273 = vmatpush1.bf16.msra.mxu0 %v3270
      %3274 = vmatprep.subr.bf16.mxu0 0
      %3275 = vmatpush1.bf16.msra.mxu0 0
      %3276 = vmatprep.subr.bf16.mxu0 0
      %3277 = vmatpush1.bf16.msra.mxu0 0
      %3278 = vmatprep.subr.bf16.mxu0 0
      %3279 = vmatpush1.bf16.msra.mxu0 0
      %3280 = vmatprep.subr.bf16.mxu0 0
      %3281 = vmatpush1.bf16.msra.mxu0 0
      %3282 = vmatprep.subr.bf16.mxu0 0
      %3283 = vmatpush1.bf16.msra.mxu0 0
      %3284 = vmatprep.subr.bf16.mxu0 0
      %3285 = vmatpush1.bf16.msra.mxu0 0
      %3286 = vmatprep.subr.bf16.mxu0 0
      %3287 = vmatpush1.bf16.msra.mxu0 0
      %3288 = vmatprep.subr.bf16.mxu0 0
      %3289 = vmatpush1.bf16.msra.mxu0 0
      %3290 = vmatprep.subr.bf16.mxu0 0
      %3291 = vmatpush1.bf16.msra.mxu0 0
      %3292 = vmatprep.subr.bf16.mxu0 0
      %3293 = vmatpush1.bf16.msra.mxu0 0
      %3294 = vmatprep.subr.bf16.mxu0 0
      %3295 = vmatpush1.bf16.msra.mxu0 0
      %3296 = vmatprep.subr.bf16.mxu0 0
      %3297 = vmatpush1.bf16.msra.mxu0 0
      %3298 = vmatprep.subr.bf16.mxu0 0
      %3299 = vmatpush1.bf16.msra.mxu0 0
      %3300 = vmatprep.subr.bf16.mxu0 0
      %3301 = vmatpush1.bf16.msra.mxu0 0
      %3302 = vmatprep.subr.bf16.mxu0 0
      %3303 = vmatpush1.bf16.msra.mxu0 0
      %3304 = vmatprep.mubr.bf16.mxu0 0
      %3305 = vmatmul.mubr.bf16.gmra.mrb[0].mxu0 %v3222
      %v3306 = vpop.f32.mrb[0].mxu0
      %v3307 = vadd.f32 %v3219, %v3306
      %v3308 = vpop.f32.mrb[0].mxu0
      %v3309 = vpop.f32.mrb[0].mxu0
      %v3310 = vadd.f32 %v3219, %v3309
      %v3311 = vpop.f32.mrb[0].mxu0
      %3312 = vmatprep.mubr.bf16.mxu0 0
      %3313 = vmatmul.mubr.bf16.gmra.mrb[0].mxu0 %v3225
      %v3314 = vpop.f32.mrb[0].mxu0
      %v3315 = vadd.f32 %v3219, %v3314
      %v3316 = vpop.f32.mrb[0].mxu0
      %v3317 = vpop.f32.mrb[0].mxu0
      %v3318 = vadd.f32 %v3219, %v3317
      %v3319 = vpop.f32.mrb[0].mxu0
      %3320 = vmatprep.mubr.bf16.mxu0 0
      %3321 = vmatmul.mubr.bf16.gmra.mrb[0].mxu0 %v3228
      %v3322 = vpop.f32.mrb[0].mxu0
      %v3323 = vadd.f32 %v3219, %v3322
      %v3324 = vpop.f32.mrb[0].mxu0
      %v3325 = vpop.f32.mrb[0].mxu0
      %v3326 = vadd.f32 %v3219, %v3325
      %v3327 = vpop.f32.mrb[0].mxu0
      %3328 = vmatprep.mubr.bf16.mxu0 0
      %3329 = vmatmul.mubr.bf16.gmra.mrb[0].mxu0 %v3231
      %v3330 = vpop.f32.mrb[0].mxu0
      %v3331 = vadd.f32 %v3219, %v3330
      %v3332 = vpop.f32.mrb[0].mxu0
      %v3333 = vpop.f32.mrb[0].mxu0
      %v3334 = vadd.f32 %v3219, %v3333
      %v3335 = vpop.f32.mrb[0].mxu0
      %3336 = vmatprep.mubr.bf16.mxu0 0
      %3337 = vmatmul.mubr.bf16.gmra.mrb[0].mxu0 %v3234
      %v3338 = vpop.f32.mrb[0].mxu0
      %v3339 = vadd.f32 %v3219, %v3338
      %v3340 = vpop.f32.mrb[0].mxu0
      %v3341 = vpop.f32.mrb[0].mxu0
      %v3342 = vadd.f32 %v3219, %v3341
      %v3343 = vpop.f32.mrb[0].mxu0
      %3344 = vmatprep.mubr.bf16.mxu0 0
      %3345 = vmatmul.mubr.bf16.gmra.mrb[0].mxu0 %v3237
      %v3346 = vpop.f32.mrb[0].mxu0
      %v3347 = vadd.f32 %v3219, %v3346
      %v3348 = vpop.f32.mrb[0].mxu0
      %v3349 = vpop.f32.mrb[0].mxu0
      %v3350 = vadd.f32 %v3219, %v3349
      %v3351 = vpop.f32.mrb[0].mxu0
      %3352 = vmatprep.mubr.bf16.mxu0 0
      %3353 = vmatmul.mubr.bf16.gmra.mrb[0].mxu0 %v3240
      %v3354 = vpop.f32.mrb[0].mxu0
      %v3355 = vadd.f32 %v3219, %v3354
      %v3356 = vpop.f32.mrb[0].mxu0
      %v3357 = vpop.f32.mrb[0].mxu0
      %v3358 = vadd.f32 %v3219, %v3357
      %v3359 = vpop.f32.mrb[0].mxu0
      %3360 = vmatprep.mubr.bf16.mxu0 0
      %3361 = vmatmul.mubr.bf16.gmra.mrb[0].mxu0 %v3243
      %v3362 = vpop.f32.mrb[0].mxu0
      %v3363 = vadd.f32 %v3219, %v3362
      %v3364 = vpop.f32.mrb[0].mxu0
      %v3365 = vpop.f32.mrb[0].mxu0
      %v3366 = vadd.f32 %v3219, %v3365
      %v3367 = vpop.f32.mrb[0].mxu0
      %3368 = vmatprep.mubr.bf16.mxu0 0
      %3369 = vmatmul.mubr.bf16.gmra.mrb[0].mxu0 %v3246
      %v3370 = vpop.f32.mrb[0].mxu0
      %v3371 = vadd.f32 %v3219, %v3370
      %v3372 = vpop.f32.mrb[0].mxu0
      %v3373 = vpop.f32.mrb[0].mxu0
      %v3374 = vadd.f32 %v3219, %v3373
      %v3375 = vpop.f32.mrb[0].mxu0
      %3376 = vmatprep.mubr.bf16.mxu0 0
      %3377 = vmatmul.mubr.bf16.gmra.mrb[0].mxu0 %v3249
      %v3378 = vpop.f32.mrb[0].mxu0
      %v3379 = vadd.f32 %v3219, %v3378
      %v3380 = vpop.f32.mrb[0].mxu0
      %v3381 = vpop.f32.mrb[0].mxu0
      %v3382 = vadd.f32 %v3219, %v3381
      %v3383 = vpop.f32.mrb[0].mxu0
      %3384 = vmatprep.mubr.bf16.mxu0 0
      %3385 = vmatmul.mubr.bf16.gmra.mrb[0].mxu0 %v3252
      %v3386 = vpop.f32.mrb[0].mxu0
      %v3387 = vadd.f32 %v3219, %v3386
      %v3388 = vpop.f32.mrb[0].mxu0
      %v3389 = vpop.f32.mrb[0].mxu0
      %v3390 = vadd.f32 %v3219, %v3389
      %v3391 = vpop.f32.mrb[0].mxu0
      %3392 = vmatprep.mubr.bf16.mxu0 0
      %3393 = vmatmul.mubr.bf16.gmra.mrb[0].mxu0 %v3255
      %v3394 = vpop.f32.mrb[0].mxu0
      %v3395 = vadd.f32 %v3219, %v3394
      %v3396 = vpop.f32.mrb[0].mxu0
      %v3397 = vpop.f32.mrb[0].mxu0
      %v3398 = vadd.f32 %v3219, %v3397
      %v3399 = vpop.f32.mrb[0].mxu0
      %3400 = vmatprep.mubr.bf16.mxu0 0
      %3401 = vmatmul.mubr.bf16.gmra.mrb[0].mxu0 %v3258
      %v3402 = vpop.f32.mrb[0].mxu0
      %v3403 = vadd.f32 %v3219, %v3402
      %v3404 = vpop.f32.mrb[0].mxu0
      %v3405 = vpop.f32.mrb[0].mxu0
      %v3406 = vadd.f32 %v3219, %v3405
      %v3407 = vpop.f32.mrb[0].mxu0
      %3408 = vmatprep.mubr.bf16.mxu0 0
      %3409 = vmatmul.mubr.bf16.gmra.mrb[0].mxu0 %v3261
      %v3410 = vpop.f32.mrb[0].mxu0
      %v3411 = vadd.f32 %v3219, %v3410
      %v3412 = vpop.f32.mrb[0].mxu0
      %v3413 = vpop.f32.mrb[0].mxu0
      %v3414 = vadd.f32 %v3219, %v3413
      %v3415 = vpop.f32.mrb[0].mxu0
      %3416 = vmatprep.mubr.bf16.mxu0 0
      %3417 = vmatmul.mubr.bf16.gmra.mrb[0].mxu0 %v3264
      %v3418 = vpop.f32.mrb[0].mxu0
      %v3419 = vadd.f32 %v3219, %v3418
      %v3420 = vpop.f32.mrb[0].mxu0
      %v3421 = vpop.f32.mrb[0].mxu0
      %v3422 = vadd.f32 %v3219, %v3421
      %v3423 = vpop.f32.mrb[0].mxu0
      %3424 = vmatprep.mubr.bf16.mxu0 0
      %3425 = vmatmul.mubr.bf16.gmra.mrb[0].mxu0 %v3267
      %v3426 = vpop.f32.mrb[0].mxu0
      %v3427 = vadd.f32 %v3219, %v3426
      %v3428 = vpop.f32.mrb[0].mxu0
      %v3429 = vpop.f32.mrb[0].mxu0
      %v3430 = vadd.f32 %v3219, %v3429
      %v3431 = vpop.f32.mrb[0].mxu0
      %3432 = vdwg.mxu0
      %v3433 = vadd.f32 %v3181, %v3307
      %v3434 = vadd.f32 %v3182, %v3310
      %v3435 = vadd.f32 %v3183, %v3315
      %v3436 = vadd.f32 %v3184, %v3318
      %v3437 = vadd.f32 %v3185, %v3323
      %v3438 = vadd.f32 %v3186, %v3326
      %v3439 = vadd.f32 %v3187, %v3331
      %v3440 = vadd.f32 %v3188, %v3334
      %v3441 = vadd.f32 %v3189, %v3339
      %v3442 = vadd.f32 %v3190, %v3342
      %v3443 = vadd.f32 %v3191, %v3347
      %v3444 = vadd.f32 %v3192, %v3350
      %v3445 = vadd.f32 %v3193, %v3355
      %v3446 = vadd.f32 %v3194, %v3358
      %v3447 = vadd.f32 %v3195, %v3363
      %v3448 = vadd.f32 %v3196, %v3366
      %v3449 = vadd.f32 %v3197, %v3371
      %v3450 = vadd.f32 %v3198, %v3374
      %v3451 = vadd.f32 %v3199, %v3379
      %v3452 = vadd.f32 %v3200, %v3382
      %v3453 = vadd.f32 %v3201, %v3387
      %v3454 = vadd.f32 %v3202, %v3390
      %v3455 = vadd.f32 %v3203, %v3395
      %v3456 = vadd.f32 %v3204, %v3398
      %v3457 = vadd.f32 %v3205, %v3403
      %v3458 = vadd.f32 %v3206, %v3406
      %v3459 = vadd.f32 %v3207, %v3411
      %v3460 = vadd.f32 %v3208, %v3414
      %v3461 = vadd.f32 %v3209, %v3419
      %v3462 = vadd.f32 %v3210, %v3422
      %v3463 = vadd.f32 %v3211, %v3427
      %v3464 = vadd.f32 %v3212, %v3430
      %vm3465 = vcmask 64512
      %3466 = vst.msk [vmem:[%s503] sm:$0xff] %vm3465, %v3433
      %3467 = vst.msk [vmem:[%s503 + $0x8] sm:$0xff] %vm3465, %v3434
      %3468 = vst.msk [vmem:[%s503 + $0x10] sm:$0xff] %vm3465, %v3435
      %3469 = vst.msk [vmem:[%s503 + $0x18] sm:$0xff] %vm3465, %v3436
      %3470 = vst.msk [vmem:[%s503 + $0x20] sm:$0xff] %vm3465, %v3437
      %3471 = vst.msk [vmem:[%s503 + $0x28] sm:$0xff] %vm3465, %v3438
      %3472 = vst.msk [vmem:[%s503 + $0x30] sm:$0xff] %vm3465, %v3439
      %3473 = vst.msk [vmem:[%s503 + $0x38] sm:$0xff] %vm3465, %v3440
      %3474 = vst.msk [vmem:[%s503 + $0x40] sm:$0xff] %vm3465, %v3441
      %3475 = vst.msk [vmem:[%s503 + $0x48] sm:$0xff] %vm3465, %v3442
      %3476 = vst.msk [vmem:[%s503 + $0x50] sm:$0xff] %vm3465, %v3443
      %3477 = vst.msk [vmem:[%s503 + $0x58] sm:$0xff] %vm3465, %v3444
      %3478 = vst.msk [vmem:[%s503 + $0x60] sm:$0xff] %vm3465, %v3445
      %3479 = vst.msk [vmem:[%s503 + $0x68] sm:$0xff] %vm3465, %v3446
      %3480 = vst.msk [vmem:[%s503 + $0x70] sm:$0xff] %vm3465, %v3447
      %3481 = vst.msk [vmem:[%s503 + $0x78] sm:$0xff] %vm3465, %v3448
      %3482 = vst.msk [vmem:[%s503 + $0x80] sm:$0xff] %vm3465, %v3449
      %3483 = vst.msk [vmem:[%s503 + $0x88] sm:$0xff] %vm3465, %v3450
      %3484 = vst.msk [vmem:[%s503 + $0x90] sm:$0xff] %vm3465, %v3451
      %3485 = vst.msk [vmem:[%s503 + $0x98] sm:$0xff] %vm3465, %v3452
      %3486 = vst.msk [vmem:[%s503 + $0xa0] sm:$0xff] %vm3465, %v3453
      %3487 = vst.msk [vmem:[%s503 + $0xa8] sm:$0xff] %vm3465, %v3454
      %3488 = vst.msk [vmem:[%s503 + $0xb0] sm:$0xff] %vm3465, %v3455
      %3489 = vst.msk [vmem:[%s503 + $0xb8] sm:$0xff] %vm3465, %v3456
      %3490 = vst.msk [vmem:[%s503 + $0xc0] sm:$0xff] %vm3465, %v3457
      %3491 = vst.msk [vmem:[%s503 + $0xc8] sm:$0xff] %vm3465, %v3458
      %3492 = vst.msk [vmem:[%s503 + $0xd0] sm:$0xff] %vm3465, %v3459
      %3493 = vst.msk [vmem:[%s503 + $0xd8] sm:$0xff] %vm3465, %v3460
      %3494 = vst.msk [vmem:[%s503 + $0xe0] sm:$0xff] %vm3465, %v3461
      %3495 = vst.msk [vmem:[%s503 + $0xe8] sm:$0xff] %vm3465, %v3462
      %3496 = vst.msk [vmem:[%s503 + $0xf0] sm:$0xff] %vm3465, %v3463
      %3497 = vst.msk [vmem:[%s503 + $0xf8] sm:$0xff] %vm3465, %v3464
      %s3498 = smul.u32 16, %s25
      %p3499 = scmp.lt.s32.totalorder %s24, 1
      %s3500 = scalar_select %p3499, %s24, 1
      %p3501 = scmp.lt.s32.totalorder %s3498, 15
      %s3502 = scalar_select %p3501, %s3498, 15
      %s3503 = smul.addr %s3502, 2
      %s3504 = smul.addr %s3500, 32
      %s3505 = sadd.s32 %s3503, %s3504
      %s3506 = smul.addr %s3505, 8
      %s3507 = scalar_lea.vmem %s9, %s3506
      // Predicated region
      $region57: #{conv_block_forward.1} parent=55 // pred_check
        %p3508 = pneg %p272
      $region58: #{conv_block_forward.1} parent=55 // pred_check_branch
        %3510 = sbr.rel (%p3508) target = $region60
      $region59: #{conv_block_forward.1} parent=55 // pred_region
        %s3511 = smul.u32 16, %s25
      $region60: #{conv_block_forward.1} parent=55 // pred_fallthru
        _
    $region56: #{conv_block_forward.1} parent=5 // pred_fallthru
      _
    %p3512 = scmp.le.s32.totalorder 2, %s15
    // Predicated region
    $region61: #{conv_block_forward.1} parent=5 // pred_check
      %p3513 = pneg %p3512
    $region62: #{conv_block_forward.1} parent=5 // pred_check_branch
      %3515 = sbr.rel (%p3513) target = $region64
    $region63: #{conv_block_forward.1} parent=5 // pred_region
      %s3516 = ssub.s32 %s15, 2
      // Predicated region
      $region65: #{conv_block_forward.1} parent=63 // pred_check
        %p3517 = pneg %p278
      $region66: #{conv_block_forward.1} parent=63 // pred_check_branch
        %3519 = sbr.rel (%p3517) target = $region68
      $region67: #{conv_block_forward.1} parent=63 // pred_region
        %s3520 = smul.u32 16, %s27
        %p3521 = scmp.lt.s32.totalorder %s26, 1
        %s3522 = scalar_select %p3521, %s26, 1
        %p3523 = scmp.lt.s32.totalorder %s3520, 15
        %s3524 = scalar_select %p3523, %s3520, 15
        %s3525 = smul.addr %s3524, 2
        %s3526 = smul.addr %s3522, 32
        %s3527 = sadd.s32 %s3525, %s3526
        %s3528 = smul.addr %s3527, 8
        %s3529 = scalar_lea.vmem %s9, %s3528
      $region68: #{conv_block_forward.1} parent=63 // pred_fallthru
        _
    $region64: #{conv_block_forward.1} parent=5 // pred_fallthru
      _
  $region6: #{conv_block_forward.1} parent=0 // loop_footer
    %s19 = sadd.s32 1, %s15
  $region7: #{conv_block_forward.1} parent=0 // loop_footer_branch
    %14 = sbr.rel target = $region3
  $region8: #{conv_block_forward.1} parent=0 // loop_exit
    _

</llo_original>
